<compile_context>
chip_gen: v5e
topology: v5e:2x2
jax: 0.10.0
libtpu: 0.0.40
codegen_flags: <defaults>
</compile_context>

<pallas_src>
import math

import jax
import jax.numpy as jnp
from jax import lax
from jax.experimental import pallas as pl
from jax.experimental.pallas import tpu as pltpu

# Safe scoped-VMEM budget on v5e/v6e (128 MiB phys) and v7x (64 MiB phys).
_VMEM_LIMIT_BYTES = 48 * 1024 * 1024


# ---------------------------------------------------------------------------
# 1) Fused Q/K/V projection: one pallas_call, three MXU dots per row tile.
#    Weights (pre-transposed) stay resident in VMEM across the row grid.
# ---------------------------------------------------------------------------
def _qkv_proj_kernel(q_ref, k_ref, v_ref, wq_ref, wk_ref, wv_ref, b_ref,
                     oq_ref, ok_ref, ov_ref):
    oq_ref[...] = jnp.dot(q_ref[...], wq_ref[...],
                          preferred_element_type=jnp.float32) + b_ref[0:1, :]
    ok_ref[...] = jnp.dot(k_ref[...], wk_ref[...],
                          preferred_element_type=jnp.float32) + b_ref[1:2, :]
    ov_ref[...] = jnp.dot(v_ref[...], wv_ref[...],
                          preferred_element_type=jnp.float32) + b_ref[2:3, :]


def qkv_proj_pallas(q, k, v, wq_t, wk_t, wv_t, b_stack, *, row_tile=256):
    n, d_in = q.shape
    d_out = wq_t.shape[1]
    tm = n if n <= row_tile else row_tile
    x_spec = pl.BlockSpec((tm, d_in), lambda i: (i, 0))
    w_spec = pl.BlockSpec((d_in, d_out), lambda i: (0, 0))
    o_spec = pl.BlockSpec((tm, d_out), lambda i: (i, 0))
    return pl.pallas_call(
        _qkv_proj_kernel,
        out_shape=[jax.ShapeDtypeStruct((n, d_out), jnp.float32)] * 3,
        grid=(pl.cdiv(n, tm),),
        in_specs=[x_spec, x_spec, x_spec, w_spec, w_spec, w_spec,
                  pl.BlockSpec((3, d_out), lambda i: (0, 0))],
        out_specs=[o_spec, o_spec, o_spec],
        compiler_params=pltpu.CompilerParams(
            dimension_semantics=("parallel",),
            vmem_limit_bytes=_VMEM_LIMIT_BYTES),
    )(q, k, v, wq_t, wk_t, wv_t, b_stack)


# ---------------------------------------------------------------------------
# 2) Generic row-tiled Linear (final fc and the rare S != L projection path).
# ---------------------------------------------------------------------------
def _linear_kernel(x_ref, wt_ref, b_ref, o_ref):
    o_ref[...] = jnp.dot(x_ref[...], wt_ref[...],
                         preferred_element_type=jnp.float32) + b_ref[...]


def linear_pallas(x, w_t, b_row, *, row_tile=256):
    n, d_in = x.shape
    d_out = w_t.shape[1]
    tm = n if n <= row_tile else row_tile
    return pl.pallas_call(
        _linear_kernel,
        out_shape=jax.ShapeDtypeStruct((n, d_out), jnp.float32),
        grid=(pl.cdiv(n, tm),),
        in_specs=[pl.BlockSpec((tm, d_in), lambda i: (i, 0)),
                  pl.BlockSpec((d_in, d_out), lambda i: (0, 0)),
                  pl.BlockSpec((1, d_out), lambda i: (0, 0))],
        out_specs=pl.BlockSpec((tm, d_out), lambda i: (i, 0)),
        compiler_params=pltpu.CompilerParams(
            dimension_semantics=("parallel",),
            vmem_limit_bytes=_VMEM_LIMIT_BYTES),
    )(x, w_t, b_row)


# ---------------------------------------------------------------------------
# 3) Channel-averaged circular auto-correlation.
#    mean_value[b, tau] = (1/(H*E)) * sum_{t,c} q[b,t,c] * k[b,(t-tau)%L,c]
#    computed as circular-diagonal sums of M_b = Q_b @ K_b^T (MXU), per batch.
# ---------------------------------------------------------------------------
def _make_meanvalue_kernel(L, inv_channels):
    def kernel(q_ref, k_ref, o_ref):
        q = q_ref[0]                                   # (L, D)
        k = k_ref[0]                                   # (L, D)
        # M[t, s] = sum_c q[t, c] * k[s, c]   (contraction dim = d_model -> MXU)
        m = lax.dot_general(q, k, (((1,), (1,)), ((), ())),
                            preferred_element_type=jnp.float32)        # (L, L)
        row = lax.broadcasted_iota(jnp.int32, (L, L), 0)
        col = lax.broadcasted_iota(jnp.int32, (L, L), 1)
        diag = row - col
        diag = jnp.where(diag < 0, diag + L, diag)     # tau id of element (t, s)
        tau_iota = lax.broadcasted_iota(jnp.int32, (1, L), 1)

        # TODO(synk): for very large L, replace this O(L^3) masked reduction
        # with an FFT / strided-roll diagonal extraction.
        def body(tau, acc):
            dsum = jnp.sum(jnp.where(diag == tau, m, 0.0))
            return acc + jnp.where(tau_iota == tau, dsum, 0.0)

        mv = lax.fori_loop(0, L, body, jnp.zeros((1, L), jnp.float32),
                           unroll=bool(L <= 32))
        o_ref[0] = mv * inv_channels
    return kernel


def mean_autocorr_pallas(q_bld, k_bld):
    B, L, D = q_bld.shape
    out = pl.pallas_call(
        _make_meanvalue_kernel(L, 1.0 / D),
        out_shape=jax.ShapeDtypeStruct((B, 1, L), jnp.float32),
        grid=(B,),
        in_specs=[pl.BlockSpec((1, L, D), lambda b: (b, 0, 0)),
                  pl.BlockSpec((1, L, D), lambda b: (b, 0, 0))],
        out_specs=pl.BlockSpec((1, 1, L), lambda b: (b, 0, 0)),
        compiler_params=pltpu.CompilerParams(
            dimension_semantics=("parallel",),
            vmem_limit_bytes=_VMEM_LIMIT_BYTES),
    )(q_bld, k_bld)
    return out[:, 0, :]                                # (B, L)


# ---------------------------------------------------------------------------
# 4) Fused time-delay aggregation.
#    Builds A[b, t, s] = sum_i w[b,i] * 1[s == (t + delay_i) % L] in-kernel from
#    scalar-prefetched (SMEM) delays/weights, then Y[b] = A[b] @ V[b] on the MXU
#    (lane-dense output, already in (B, L, H, E)-flattened layout).
# ---------------------------------------------------------------------------
def _make_agg_kernel(L, top_k):
    def kernel(delays_ref, w_ref, v_ref, o_ref):
        b = pl.program_id(0)
        row = lax.broadcasted_iota(jnp.int32, (L, L), 0)   # t
        col = lax.broadcasted_iota(jnp.int32, (L, L), 1)   # s

        def body(i, acc):
            d = delays_ref[i]                              # scalar int32 (SMEM)
            shifted = row + d
            shifted = jnp.where(shifted >= L, shifted - L, shifted)
            wi = w_ref[b, i]                               # scalar f32 (SMEM)
            return acc + jnp.where(col == shifted, wi, 0.0)

        a = lax.fori_loop(0, top_k, body, jnp.zeros((L, L), jnp.float32),
                          unroll=True)
        o_ref[0] = jnp.dot(a, v_ref[0], preferred_element_type=jnp.float32)
    return kernel


def time_delay_agg_pallas(delays, weights, v_bld):
    B, L, D = v_bld.shape
    top_k = delays.shape[0]
    return pl.pallas_call(
        _make_agg_kernel(L, top_k),
        out_shape=jax.ShapeDtypeStruct((B, L, D), jnp.float32),
        grid_spec=pltpu.PrefetchScalarGridSpec(
            num_scalar_prefetch=2, grid=(B,),
            in_specs=[pl.BlockSpec((1, L, D), lambda b, dl, w: (b, 0, 0))],
            out_specs=pl.BlockSpec((1, L, D), lambda b, dl, w: (b, 0, 0))),
        compiler_params=pltpu.CompilerParams(
            dimension_semantics=("parallel",),
            vmem_limit_bytes=_VMEM_LIMIT_BYTES),
    )(delays.astype(jnp.int32), weights.astype(jnp.float32), v_bld)


# ----------------------------- forward pass --------------------------------
def custom_multi_head_attention(Q, K, V, packed, n_heads, *, factor=1.0,
                                compute_dtype=jnp.float32, row_tile=256):
    B, L, d_model = Q.shape
    S = K.shape[1]
    H = n_heads
    d_k = d_model // n_heads
    cd = compute_dtype

    wq_t = packed["wq_t"].astype(cd)
    wk_t = packed["wk_t"].astype(cd)
    wv_t = packed["wv_t"].astype(cd)
    wf_t = packed["wf_t"].astype(cd)

    # --- Linear projections (fused Q/K/V when sequence lengths match) ---
    if S == L:
        qp, kp, vp = qkv_proj_pallas(
            Q.reshape(B * L, d_model).astype(cd),
            K.reshape(B * L, d_model).astype(cd),
            V.reshape(B * L, d_model).astype(cd),
            wq_t, wk_t, wv_t, packed["b_qkv"], row_tile=row_tile)
        q_proj = qp.reshape(B, L, d_model)
        k_proj = kp.reshape(B, L, d_model)
        v_proj = vp.reshape(B, L, d_model)
    else:
        q_proj = linear_pallas(Q.reshape(B * L, d_model).astype(cd), wq_t,
                               packed["bq"], row_tile=row_tile).reshape(B, L, d_model)
        k_proj = linear_pallas(K.reshape(B * S, d_model).astype(cd), wk_t,
                               packed["bk"], row_tile=row_tile).reshape(B, S, d_model)
        v_proj = linear_pallas(V.reshape(B * S, d_model).astype(cd), wv_t,
                               packed["bv"], row_tile=row_tile).reshape(B, S, d_model)
        # Canonical AutoCorrelation: zero-pad / truncate keys & values to L.
        if S < L:
            pad = jnp.zeros((B, L - S, d_model), jnp.float32)
            k_proj = jnp.concatenate([k_proj, pad], axis=1)
            v_proj = jnp.concatenate([v_proj, pad], axis=1)
        else:
            k_proj = k_proj[:, :L]
            v_proj = v_proj[:, :L]

    # --- channel-averaged circular auto-correlation (MXU + diag sums) ---
    mean_value = mean_autocorr_pallas(q_proj.astype(cd), k_proj.astype(cd))   # (B, L)

    # --- training-mode time-delay selection (tiny, data-dependent -> XLA) ---
    top_k = max(1, min(L, int(factor * math.log(L))))
    _, delays = lax.top_k(jnp.mean(mean_value, axis=0), top_k)                # (top_k,)
    weights = jnp.take(mean_value, delays, axis=1)                            # (B, top_k)
    tmp_corr = jax.nn.softmax(weights, axis=-1)                               # (B, top_k)

    # --- fused aggregation: (B, L, d_model) lane-dense output, layout (B,L,H,E) ---
    Y = time_delay_agg_pallas(delays, tmp_corr, v_proj.astype(cd))

    # --- exact replica of the module's transpose(1,2).view(B,-1,H*d_k) epilogue ---
    Z = jnp.transpose(Y.reshape(B, L, H, d_k), (0, 2, 1, 3))    # (B, H, L, E)
    context = Z.reshape(B * L, H * d_k)
    out = linear_pallas(context.astype(cd), wf_t, packed["bf"], row_tile=row_tile)
    return out.reshape(B, L, d_model)


# ----------------------------- params ---------------------------------------
def init_params(key, d_model):
    """Deterministic torch.nn.Linear-style params: U(-1/sqrt(fan_in), 1/sqrt(fan_in))."""
    bound = 1.0 / math.sqrt(d_model)
    ks = jax.random.split(key, 8)

    def u(k, shape):
        return jax.random.uniform(k, shape, jnp.float32, -bound, bound)

    return {
        "wq": u(ks[0], (d_model, d_model)), "bq": u(ks[1], (d_model,)),
        "wk": u(ks[2], (d_model, d_model)), "bk": u(ks[3], (d_model,)),
        "wv": u(ks[4], (d_model, d_model)), "bv": u(ks[5], (d_model,)),
        "wf": u(ks[6], (d_model, d_model)), "bf": u(ks[7], (d_model,)),
    }


def pack_params(params):
    """One-time packing: pre-transpose weights (torch Linear stores (out,in))
    and stack biases, so the forward pays no per-call w.T / concat HBM traffic."""
    d = params["wq"].shape[0]
    return {
        "wq_t": params["wq"].T, "wk_t": params["wk"].T,
        "wv_t": params["wv"].T, "wf_t": params["wf"].T,
        "b_qkv": jnp.stack([params["bq"], params["bk"], params["bv"]], axis=0),  # (3, d)
        "bq": params["bq"].reshape(1, d),
        "bk": params["bk"].reshape(1, d),
        "bv": params["bv"].reshape(1, d),
        "bf": params["bf"].reshape(1, d),
    }


if __name__ == "__main__":
    B, L, d_model, n_heads = 2, 8, 32, 4
    key = jax.random.PRNGKey(0)
    kq, kk, kv, kparam = jax.random.split(key, 4)
    Q = jax.random.normal(kq, (B, L, d_model), jnp.float32)
    K = jax.random.normal(kk, (B, L, d_model), jnp.float32)
    V = jax.random.normal(kv, (B, L, d_model), jnp.float32)
    packed = pack_params(init_params(kparam, d_model))

    fwd = jax.jit(custom_multi_head_attention, static_argnums=(4,))
    out = fwd(Q, K, V, packed, n_heads)
    jax.block_until_ready(out)

    assert out.shape == (B, L, d_model), out.shape
    assert out.dtype == jnp.float32, out.dtype
    assert bool(jnp.all(jnp.isfinite(out)))
    print("KERNEL_OK")
</pallas_src>

<mosaic_0001>
module attributes {stable_mosaic.version = 11 : i64} {
  func.func @_qkv_proj_kernel(%arg0: i32, %arg1: memref<16x32xf32, #tpu.memory_space<vmem>>, %arg2: memref<16x32xf32, #tpu.memory_space<vmem>>, %arg3: memref<16x32xf32, #tpu.memory_space<vmem>>, %arg4: memref<32x32xf32, #tpu.memory_space<vmem>>, %arg5: memref<32x32xf32, #tpu.memory_space<vmem>>, %arg6: memref<32x32xf32, #tpu.memory_space<vmem>>, %arg7: memref<3x32xf32, #tpu.memory_space<vmem>>, %arg8: memref<16x32xf32, #tpu.memory_space<vmem>>, %arg9: memref<16x32xf32, #tpu.memory_space<vmem>>, %arg10: memref<16x32xf32, #tpu.memory_space<vmem>>) attributes {dimension_semantics = [#tpu.dimension_semantics<parallel>], iteration_bounds = array<i64: 1>, scalar_prefetch = 0 : i64, scratch_operands = 0 : i64, tpu.core_type = #tpu.core_type<tc>, window_params = [{transform_indices = @transform_0, window_bounds = array<i64: 16, 32>}, {transform_indices = @transform_1, window_bounds = array<i64: 16, 32>}, {transform_indices = @transform_2, window_bounds = array<i64: 16, 32>}, {pipeline_mode = #tpu.pipeline_mode<synchronous>, transform_indices = @transform_3, window_bounds = array<i64: 32, 32>}, {pipeline_mode = #tpu.pipeline_mode<synchronous>, transform_indices = @transform_4, window_bounds = array<i64: 32, 32>}, {pipeline_mode = #tpu.pipeline_mode<synchronous>, transform_indices = @transform_5, window_bounds = array<i64: 32, 32>}, {pipeline_mode = #tpu.pipeline_mode<synchronous>, transform_indices = @transform_6, window_bounds = array<i64: 3, 32>}, {transform_indices = @transform_7, window_bounds = array<i64: 16, 32>}, {transform_indices = @transform_8, window_bounds = array<i64: 16, 32>}, {transform_indices = @transform_9, window_bounds = array<i64: 16, 32>}]} {
    %c0 = arith.constant 0 : index
    %c0_0 = arith.constant 0 : index
    %0 = vector.load %arg1[%c0, %c0_0] : memref<16x32xf32, #tpu.memory_space<vmem>>, vector<16x32xf32>
    %c0_1 = arith.constant 0 : index
    %c0_2 = arith.constant 0 : index
    %1 = vector.load %arg4[%c0_1, %c0_2] : memref<32x32xf32, #tpu.memory_space<vmem>>, vector<32x32xf32>
    %cst = arith.constant dense<0.000000e+00> : vector<16x32xf32>
    %2 = tpu.matmul %0, %1, %cst {dimension_numbers = #tpu.dot_dimension_numbers<[1], [0], [0], [1], [0, 0, 1, 1], [], []>} : vector<16x32xf32>, vector<32x32xf32>, vector<16x32xf32> -> vector<16x32xf32>
    %c0_3 = arith.constant 0 : index
    %c0_4 = arith.constant 0 : index
    %3 = vector.load %arg7[%c0_3, %c0_4] : memref<3x32xf32, #tpu.memory_space<vmem>>, vector<1x32xf32>
    %4 = vector.broadcast %3 : vector<1x32xf32> to vector<16x32xf32>
    %5 = arith.addf %2, %4 : vector<16x32xf32>
    %c0_5 = arith.constant 0 : index
    %c0_6 = arith.constant 0 : index
    %6 = vector.load %arg8[%c0_5, %c0_6] : memref<16x32xf32, #tpu.memory_space<vmem>>, vector<16x32xf32>
    tpu.vector_store %arg8[%c0_5, %c0_6], %5 {strides = array<i32>} : memref<16x32xf32, #tpu.memory_space<vmem>>, vector<16x32xf32>,
    %c0_7 = arith.constant 0 : index
    %c0_8 = arith.constant 0 : index
    %7 = vector.load %arg2[%c0_7, %c0_8] : memref<16x32xf32, #tpu.memory_space<vmem>>, vector<16x32xf32>
    %c0_9 = arith.constant 0 : index
    %c0_10 = arith.constant 0 : index
    %8 = vector.load %arg5[%c0_9, %c0_10] : memref<32x32xf32, #tpu.memory_space<vmem>>, vector<32x32xf32>
    %cst_11 = arith.constant dense<0.000000e+00> : vector<16x32xf32>
    %9 = tpu.matmul %7, %8, %cst_11 {dimension_numbers = #tpu.dot_dimension_numbers<[1], [0], [0], [1], [0, 0, 1, 1], [], []>} : vector<16x32xf32>, vector<32x32xf32>, vector<16x32xf32> -> vector<16x32xf32>
    %c1 = arith.constant 1 : index
    %c0_12 = arith.constant 0 : index
    %10 = vector.load %arg7[%c1, %c0_12] : memref<3x32xf32, #tpu.memory_space<vmem>>, vector<1x32xf32>
    %11 = vector.broadcast %10 : vector<1x32xf32> to vector<16x32xf32>
    %12 = arith.addf %9, %11 : vector<16x32xf32>
    %c0_13 = arith.constant 0 : index
    %c0_14 = arith.constant 0 : index
    %13 = vector.load %arg9[%c0_13, %c0_14] : memref<16x32xf32, #tpu.memory_space<vmem>>, vector<16x32xf32>
    tpu.vector_store %arg9[%c0_13, %c0_14], %12 {strides = array<i32>} : memref<16x32xf32, #tpu.memory_space<vmem>>, vector<16x32xf32>,
    %c0_15 = arith.constant 0 : index
    %c0_16 = arith.constant 0 : index
    %14 = vector.load %arg3[%c0_15, %c0_16] : memref<16x32xf32, #tpu.memory_space<vmem>>, vector<16x32xf32>
    %c0_17 = arith.constant 0 : index
    %c0_18 = arith.constant 0 : index
    %15 = vector.load %arg6[%c0_17, %c0_18] : memref<32x32xf32, #tpu.memory_space<vmem>>, vector<32x32xf32>
    %cst_19 = arith.constant dense<0.000000e+00> : vector<16x32xf32>
    %16 = tpu.matmul %14, %15, %cst_19 {dimension_numbers = #tpu.dot_dimension_numbers<[1], [0], [0], [1], [0, 0, 1, 1], [], []>} : vector<16x32xf32>, vector<32x32xf32>, vector<16x32xf32> -> vector<16x32xf32>
    %c2 = arith.constant 2 : index
    %c0_20 = arith.constant 0 : index
    %17 = vector.load %arg7[%c2, %c0_20] : memref<3x32xf32, #tpu.memory_space<vmem>>, vector<1x32xf32>
    %18 = vector.broadcast %17 : vector<1x32xf32> to vector<16x32xf32>
    %19 = arith.addf %16, %18 : vector<16x32xf32>
    %c0_21 = arith.constant 0 : index
    %c0_22 = arith.constant 0 : index
    %20 = vector.load %arg10[%c0_21, %c0_22] : memref<16x32xf32, #tpu.memory_space<vmem>>, vector<16x32xf32>
    tpu.vector_store %arg10[%c0_21, %c0_22], %19 {strides = array<i32>} : memref<16x32xf32, #tpu.memory_space<vmem>>, vector<16x32xf32>,
    return
  }
  func.func @transform_0(%arg0: i32) -> (i32, i32) {
    %c0_i32 = arith.constant 0 : i32
    %c0_i32_0 = arith.constant 0 : i32
    return %arg0, %c0_i32 : i32, i32
  }
  func.func @transform_1(%arg0: i32) -> (i32, i32) {
    %c0_i32 = arith.constant 0 : i32
    %c0_i32_0 = arith.constant 0 : i32
    return %arg0, %c0_i32 : i32, i32
  }
  func.func @transform_2(%arg0: i32) -> (i32, i32) {
    %c0_i32 = arith.constant 0 : i32
    %c0_i32_0 = arith.constant 0 : i32
    return %arg0, %c0_i32 : i32, i32
  }
  func.func @transform_3(%arg0: i32) -> (i32, i32) {
    %c0_i32 = arith.constant 0 : i32
    %c0_i32_0 = arith.constant 0 : i32
    %c0_i32_1 = arith.constant 0 : i32
    return %c0_i32, %c0_i32_0 : i32, i32
  }
  func.func @transform_4(%arg0: i32) -> (i32, i32) {
    %c0_i32 = arith.constant 0 : i32
    %c0_i32_0 = arith.constant 0 : i32
    %c0_i32_1 = arith.constant 0 : i32
    return %c0_i32, %c0_i32_0 : i32, i32
  }
  func.func @transform_5(%arg0: i32) -> (i32, i32) {
    %c0_i32 = arith.constant 0 : i32
    %c0_i32_0 = arith.constant 0 : i32
    %c0_i32_1 = arith.constant 0 : i32
    return %c0_i32, %c0_i32_0 : i32, i32
  }
  func.func @transform_6(%arg0: i32) -> (i32, i32) {
    %c0_i32 = arith.constant 0 : i32
    %c0_i32_0 = arith.constant 0 : i32
    %c0_i32_1 = arith.constant 0 : i32
    return %c0_i32, %c0_i32_0 : i32, i32
  }
  func.func @transform_7(%arg0: i32) -> (i32, i32) {
    %c0_i32 = arith.constant 0 : i32
    %c0_i32_0 = arith.constant 0 : i32
    return %arg0, %c0_i32 : i32, i32
  }
  func.func @transform_8(%arg0: i32) -> (i32, i32) {
    %c0_i32 = arith.constant 0 : i32
    %c0_i32_0 = arith.constant 0 : i32
    return %arg0, %c0_i32 : i32, i32
  }
  func.func @transform_9(%arg0: i32) -> (i32, i32) {
    %c0_i32 = arith.constant 0 : i32
    %c0_i32_0 = arith.constant 0 : i32
    return %arg0, %c0_i32 : i32, i32
  }
}

module attributes {stable_mosaic.version = 11 : i64} {
  func.func @kernel(%arg0: i32, %arg1: memref<1x8x32xf32, #tpu.memory_space<vmem>>, %arg2: memref<1x8x32xf32, #tpu.memory_space<vmem>>, %arg3: memref<1x1x8xf32, #tpu.memory_space<vmem>>) attributes {dimension_semantics = [#tpu.dimension_semantics<parallel>], iteration_bounds = array<i64: 2>, scalar_prefetch = 0 : i64, scratch_operands = 0 : i64, tpu.core_type = #tpu.core_type<tc>, window_params = [{transform_indices = @transform_0, window_bounds = array<i64: 1, 8, 32>}, {transform_indices = @transform_1, window_bounds = array<i64: 1, 8, 32>}, {transform_indices = @transform_2, window_bounds = array<i64: 1, 1, 8>}]} {
    %c0 = arith.constant 0 : index
    %c0_0 = arith.constant 0 : index
    %c0_1 = arith.constant 0 : index
    %0 = vector.load %arg1[%c0, %c0_0, %c0_1] : memref<1x8x32xf32, #tpu.memory_space<vmem>>, vector<1x8x32xf32>
    %1 = vector.shape_cast %0 : vector<1x8x32xf32> to vector<8x32xf32>
    %c0_2 = arith.constant 0 : index
    %c0_3 = arith.constant 0 : index
    %c0_4 = arith.constant 0 : index
    %2 = vector.load %arg2[%c0_2, %c0_3, %c0_4] : memref<1x8x32xf32, #tpu.memory_space<vmem>>, vector<1x8x32xf32>
    %3 = vector.shape_cast %2 : vector<1x8x32xf32> to vector<8x32xf32>
    %cst = arith.constant dense<0.000000e+00> : vector<8x8xf32>
    %4 = tpu.matmul %1, %3, %cst {dimension_numbers = #tpu.dot_dimension_numbers<[1], [1], [0], [0], [0, 0, 1, 0], [], []>} : vector<8x32xf32>, vector<8x32xf32>, vector<8x8xf32> -> vector<8x8xf32>
    %5 = tpu.iota {dimensions = array<i32: 0>} : vector<8x8xi32>
    %6 = tpu.iota {dimensions = array<i32: 1>} : vector<8x8xi32>
    %7 = arith.subi %5, %6 : vector<8x8xi32>
    %c0_i32 = arith.constant 0 : i32
    %8 = vector.broadcast %c0_i32 : i32 to vector<8x8xi32>
    %9 = arith.cmpi slt, %7, %8 : vector<8x8xi32>
    %c8_i32 = arith.constant 8 : i32
    %10 = vector.broadcast %c8_i32 : i32 to vector<8x8xi32>
    %11 = arith.addi %7, %10 : vector<8x8xi32>
    %12 = arith.select %9, %11, %7 : vector<8x8xi1>, vector<8x8xi32>
    %13 = tpu.iota {dimensions = array<i32: 1>} : vector<1x8xi32>
    %cst_5 = arith.constant 0.000000e+00 : f32
    %14 = vector.broadcast %cst_5 : f32 to vector<1x8xf32>
    %c0_i32_6 = arith.constant 0 : i32
    %15 = vector.broadcast %c0_i32_6 : i32 to vector<8x8xi32>
    %16 = arith.cmpi eq, %12, %15 : vector<8x8xi32>
    %cst_7 = arith.constant 0.000000e+00 : f32
    %17 = vector.broadcast %cst_7 : f32 to vector<8x8xf32>
    %18 = arith.select %16, %4, %17 : vector<8x8xi1>, vector<8x8xf32>
    %19 = vector.shape_cast %18 : vector<8x8xf32> to vector<1x8x8xf32>
    %cst_8 = arith.constant dense<0.000000e+00> : vector<1xf32>
    %20 = vector.multi_reduction <add>, %19, %cst_8 [1, 2] : vector<1x8x8xf32> to vector<1xf32>
    %21 = vector.shape_cast %20 : vector<1xf32> to vector<1x1x1xf32>
    %22 = vector.extract %21[0, 0, 0] : f32 from vector<1x1x1xf32>
    %23 = vector.broadcast %c0_i32_6 : i32 to vector<1x8xi32>
    %24 = arith.cmpi eq, %13, %23 : vector<1x8xi32>
    %cst_9 = arith.constant 0.000000e+00 : f32
    %25 = vector.broadcast %22 : f32 to vector<1x8xf32>
    %26 = vector.broadcast %cst_9 : f32 to vector<1x8xf32>
    %27 = arith.select %24, %25, %26 : vector<1x8xi1>, vector<1x8xf32>
    %28 = arith.addf %14, %27 : vector<1x8xf32>
    %c1_i32 = arith.constant 1 : i32
    %29 = vector.broadcast %c1_i32 : i32 to vector<8x8xi32>
    %30 = arith.cmpi eq, %12, %29 : vector<8x8xi32>
    %cst_10 = arith.constant 0.000000e+00 : f32
    %31 = vector.broadcast %cst_10 : f32 to vector<8x8xf32>
    %32 = arith.select %30, %4, %31 : vector<8x8xi1>, vector<8x8xf32>
    %33 = vector.shape_cast %32 : vector<8x8xf32> to vector<1x8x8xf32>
    %cst_11 = arith.constant dense<0.000000e+00> : vector<1xf32>
    %34 = vector.multi_reduction <add>, %33, %cst_11 [1, 2] : vector<1x8x8xf32> to vector<1xf32>
    %35 = vector.shape_cast %34 : vector<1xf32> to vector<1x1x1xf32>
    %36 = vector.extract %35[0, 0, 0] : f32 from vector<1x1x1xf32>
    %37 = vector.broadcast %c1_i32 : i32 to vector<1x8xi32>
    %38 = arith.cmpi eq, %13, %37 : vector<1x8xi32>
    %cst_12 = arith.constant 0.000000e+00 : f32
    %39 = vector.broadcast %36 : f32 to vector<1x8xf32>
    %40 = vector.broadcast %cst_12 : f32 to vector<1x8xf32>
    %41 = arith.select %38, %39, %40 : vector<1x8xi1>, vector<1x8xf32>
    %42 = arith.addf %28, %41 : vector<1x8xf32>
    %c2_i32 = arith.constant 2 : i32
    %43 = vector.broadcast %c2_i32 : i32 to vector<8x8xi32>
    %44 = arith.cmpi eq, %12, %43 : vector<8x8xi32>
    %cst_13 = arith.constant 0.000000e+00 : f32
    %45 = vector.broadcast %cst_13 : f32 to vector<8x8xf32>
    %46 = arith.select %44, %4, %45 : vector<8x8xi1>, vector<8x8xf32>
    %47 = vector.shape_cast %46 : vector<8x8xf32> to vector<1x8x8xf32>
    %cst_14 = arith.constant dense<0.000000e+00> : vector<1xf32>
    %48 = vector.multi_reduction <add>, %47, %cst_14 [1, 2] : vector<1x8x8xf32> to vector<1xf32>
    %49 = vector.shape_cast %48 : vector<1xf32> to vector<1x1x1xf32>
    %50 = vector.extract %49[0, 0, 0] : f32 from vector<1x1x1xf32>
    %51 = vector.broadcast %c2_i32 : i32 to vector<1x8xi32>
    %52 = arith.cmpi eq, %13, %51 : vector<1x8xi32>
    %cst_15 = arith.constant 0.000000e+00 : f32
    %53 = vector.broadcast %50 : f32 to vector<1x8xf32>
    %54 = vector.broadcast %cst_15 : f32 to vector<1x8xf32>
    %55 = arith.select %52, %53, %54 : vector<1x8xi1>, vector<1x8xf32>
    %56 = arith.addf %42, %55 : vector<1x8xf32>
    %c3_i32 = arith.constant 3 : i32
    %57 = vector.broadcast %c3_i32 : i32 to vector<8x8xi32>
    %58 = arith.cmpi eq, %12, %57 : vector<8x8xi32>
    %cst_16 = arith.constant 0.000000e+00 : f32
    %59 = vector.broadcast %cst_16 : f32 to vector<8x8xf32>
    %60 = arith.select %58, %4, %59 : vector<8x8xi1>, vector<8x8xf32>
    %61 = vector.shape_cast %60 : vector<8x8xf32> to vector<1x8x8xf32>
    %cst_17 = arith.constant dense<0.000000e+00> : vector<1xf32>
    %62 = vector.multi_reduction <add>, %61, %cst_17 [1, 2] : vector<1x8x8xf32> to vector<1xf32>
    %63 = vector.shape_cast %62 : vector<1xf32> to vector<1x1x1xf32>
    %64 = vector.extract %63[0, 0, 0] : f32 from vector<1x1x1xf32>
    %65 = vector.broadcast %c3_i32 : i32 to vector<1x8xi32>
    %66 = arith.cmpi eq, %13, %65 : vector<1x8xi32>
    %cst_18 = arith.constant 0.000000e+00 : f32
    %67 = vector.broadcast %64 : f32 to vector<1x8xf32>
    %68 = vector.broadcast %cst_18 : f32 to vector<1x8xf32>
    %69 = arith.select %66, %67, %68 : vector<1x8xi1>, vector<1x8xf32>
    %70 = arith.addf %56, %69 : vector<1x8xf32>
    %c4_i32 = arith.constant 4 : i32
    %71 = vector.broadcast %c4_i32 : i32 to vector<8x8xi32>
    %72 = arith.cmpi eq, %12, %71 : vector<8x8xi32>
    %cst_19 = arith.constant 0.000000e+00 : f32
    %73 = vector.broadcast %cst_19 : f32 to vector<8x8xf32>
    %74 = arith.select %72, %4, %73 : vector<8x8xi1>, vector<8x8xf32>
    %75 = vector.shape_cast %74 : vector<8x8xf32> to vector<1x8x8xf32>
    %cst_20 = arith.constant dense<0.000000e+00> : vector<1xf32>
    %76 = vector.multi_reduction <add>, %75, %cst_20 [1, 2] : vector<1x8x8xf32> to vector<1xf32>
    %77 = vector.shape_cast %76 : vector<1xf32> to vector<1x1x1xf32>
    %78 = vector.extract %77[0, 0, 0] : f32 from vector<1x1x1xf32>
    %79 = vector.broadcast %c4_i32 : i32 to vector<1x8xi32>
    %80 = arith.cmpi eq, %13, %79 : vector<1x8xi32>
    %cst_21 = arith.constant 0.000000e+00 : f32
    %81 = vector.broadcast %78 : f32 to vector<1x8xf32>
    %82 = vector.broadcast %cst_21 : f32 to vector<1x8xf32>
    %83 = arith.select %80, %81, %82 : vector<1x8xi1>, vector<1x8xf32>
    %84 = arith.addf %70, %83 : vector<1x8xf32>
    %c5_i32 = arith.constant 5 : i32
    %85 = vector.broadcast %c5_i32 : i32 to vector<8x8xi32>
    %86 = arith.cmpi eq, %12, %85 : vector<8x8xi32>
    %cst_22 = arith.constant 0.000000e+00 : f32
    %87 = vector.broadcast %cst_22 : f32 to vector<8x8xf32>
    %88 = arith.select %86, %4, %87 : vector<8x8xi1>, vector<8x8xf32>
    %89 = vector.shape_cast %88 : vector<8x8xf32> to vector<1x8x8xf32>
    %cst_23 = arith.constant dense<0.000000e+00> : vector<1xf32>
    %90 = vector.multi_reduction <add>, %89, %cst_23 [1, 2] : vector<1x8x8xf32> to vector<1xf32>
    %91 = vector.shape_cast %90 : vector<1xf32> to vector<1x1x1xf32>
    %92 = vector.extract %91[0, 0, 0] : f32 from vector<1x1x1xf32>
    %93 = vector.broadcast %c5_i32 : i32 to vector<1x8xi32>
    %94 = arith.cmpi eq, %13, %93 : vector<1x8xi32>
    %cst_24 = arith.constant 0.000000e+00 : f32
    %95 = vector.broadcast %92 : f32 to vector<1x8xf32>
    %96 = vector.broadcast %cst_24 : f32 to vector<1x8xf32>
    %97 = arith.select %94, %95, %96 : vector<1x8xi1>, vector<1x8xf32>
    %98 = arith.addf %84, %97 : vector<1x8xf32>
    %c6_i32 = arith.constant 6 : i32
    %99 = vector.broadcast %c6_i32 : i32 to vector<8x8xi32>
    %100 = arith.cmpi eq, %12, %99 : vector<8x8xi32>
    %cst_25 = arith.constant 0.000000e+00 : f32
    %101 = vector.broadcast %cst_25 : f32 to vector<8x8xf32>
    %102 = arith.select %100, %4, %101 : vector<8x8xi1>, vector<8x8xf32>
    %103 = vector.shape_cast %102 : vector<8x8xf32> to vector<1x8x8xf32>
    %cst_26 = arith.constant dense<0.000000e+00> : vector<1xf32>
    %104 = vector.multi_reduction <add>, %103, %cst_26 [1, 2] : vector<1x8x8xf32> to vector<1xf32>
    %105 = vector.shape_cast %104 : vector<1xf32> to vector<1x1x1xf32>
    %106 = vector.extract %105[0, 0, 0] : f32 from vector<1x1x1xf32>
    %107 = vector.broadcast %c6_i32 : i32 to vector<1x8xi32>
    %108 = arith.cmpi eq, %13, %107 : vector<1x8xi32>
    %cst_27 = arith.constant 0.000000e+00 : f32
    %109 = vector.broadcast %106 : f32 to vector<1x8xf32>
    %110 = vector.broadcast %cst_27 : f32 to vector<1x8xf32>
    %111 = arith.select %108, %109, %110 : vector<1x8xi1>, vector<1x8xf32>
    %112 = arith.addf %98, %111 : vector<1x8xf32>
    %c7_i32 = arith.constant 7 : i32
    %113 = vector.broadcast %c7_i32 : i32 to vector<8x8xi32>
    %114 = arith.cmpi eq, %12, %113 : vector<8x8xi32>
    %cst_28 = arith.constant 0.000000e+00 : f32
    %115 = vector.broadcast %cst_28 : f32 to vector<8x8xf32>
    %116 = arith.select %114, %4, %115 : vector<8x8xi1>, vector<8x8xf32>
    %117 = vector.shape_cast %116 : vector<8x8xf32> to vector<1x8x8xf32>
    %cst_29 = arith.constant dense<0.000000e+00> : vector<1xf32>
    %118 = vector.multi_reduction <add>, %117, %cst_29 [1, 2] : vector<1x8x8xf32> to vector<1xf32>
    %119 = vector.shape_cast %118 : vector<1xf32> to vector<1x1x1xf32>
    %120 = vector.extract %119[0, 0, 0] : f32 from vector<1x1x1xf32>
    %121 = vector.broadcast %c7_i32 : i32 to vector<1x8xi32>
    %122 = arith.cmpi eq, %13, %121 : vector<1x8xi32>
    %cst_30 = arith.constant 0.000000e+00 : f32
    %123 = vector.broadcast %120 : f32 to vector<1x8xf32>
    %124 = vector.broadcast %cst_30 : f32 to vector<1x8xf32>
    %125 = arith.select %122, %123, %124 : vector<1x8xi1>, vector<1x8xf32>
    %126 = arith.addf %112, %125 : vector<1x8xf32>
    %c8_i32_31 = arith.constant 8 : i32
    %cst_32 = arith.constant 3.125000e-02 : f32
    %127 = vector.broadcast %cst_32 : f32 to vector<1x8xf32>
    %128 = arith.mulf %126, %127 : vector<1x8xf32>
    %c0_33 = arith.constant 0 : index
    %c0_34 = arith.constant 0 : index
    %c0_35 = arith.constant 0 : index
    %129 = vector.load %arg3[%c0_33, %c0_34, %c0_35] : memref<1x1x8xf32, #tpu.memory_space<vmem>>, vector<1x1x8xf32>
    %130 = vector.shape_cast %129 : vector<1x1x8xf32> to vector<1x8xf32>
    %131 = vector.shape_cast %128 : vector<1x8xf32> to vector<1x1x8xf32>
    tpu.vector_store %arg3[%c0_33, %c0_34, %c0_35], %131 {strides = array<i32>} : memref<1x1x8xf32, #tpu.memory_space<vmem>>, vector<1x1x8xf32>,
    return
  }
  func.func @transform_0(%arg0: i32) -> (i32, i32, i32) {
    %c0_i32 = arith.constant 0 : i32
    %c0_i32_0 = arith.constant 0 : i32
    %c0_i32_1 = arith.constant 0 : i32
    return %arg0, %c0_i32, %c0_i32_0 : i32, i32, i32
  }
  func.func @transform_1(%arg0: i32) -> (i32, i32, i32) {
    %c0_i32 = arith.constant 0 : i32
    %c0_i32_0 = arith.constant 0 : i32
    %c0_i32_1 = arith.constant 0 : i32
    return %arg0, %c0_i32, %c0_i32_0 : i32, i32, i32
  }
  func.func @transform_2(%arg0: i32) -> (i32, i32, i32) {
    %c0_i32 = arith.constant 0 : i32
    %c0_i32_0 = arith.constant 0 : i32
    %c0_i32_1 = arith.constant 0 : i32
    return %arg0, %c0_i32, %c0_i32_0 : i32, i32, i32
  }
}

module attributes {stable_mosaic.version = 11 : i64} {
  func.func @kernel(%arg0: i32, %arg1: memref<2xi32, #tpu.memory_space<smem>>, %arg2: memref<2x2xf32, #tpu.memory_space<smem>>, %arg3: memref<1x8x32xf32, #tpu.memory_space<vmem>>, %arg4: memref<1x8x32xf32, #tpu.memory_space<vmem>>) attributes {dimension_semantics = [#tpu.dimension_semantics<parallel>], iteration_bounds = array<i64: 2>, scalar_prefetch = 2 : i64, scratch_operands = 0 : i64, tpu.core_type = #tpu.core_type<tc>, window_params = [{transform_indices = @transform_0, window_bounds = array<i64: 1, 8, 32>}, {transform_indices = @transform_1, window_bounds = array<i64: 1, 8, 32>}]} {
    %0 = tpu.iota {dimensions = array<i32: 0>} : vector<8x8xi32>
    %1 = tpu.iota {dimensions = array<i32: 1>} : vector<8x8xi32>
    %cst = arith.constant 0.000000e+00 : f32
    %2 = vector.broadcast %cst : f32 to vector<8x8xf32>
    %c0_i32 = arith.constant 0 : i32
    %3 = arith.index_cast %c0_i32 : i32 to index
    %4 = memref.load %arg1[%3] : memref<2xi32, #tpu.memory_space<smem>>
    %5 = vector.broadcast %4 : i32 to vector<8x8xi32>
    %6 = arith.addi %0, %5 : vector<8x8xi32>
    %c8_i32 = arith.constant 8 : i32
    %7 = vector.broadcast %c8_i32 : i32 to vector<8x8xi32>
    %8 = arith.cmpi sge, %6, %7 : vector<8x8xi32>
    %c8_i32_0 = arith.constant 8 : i32
    %9 = vector.broadcast %c8_i32_0 : i32 to vector<8x8xi32>
    %10 = arith.subi %6, %9 : vector<8x8xi32>
    %11 = arith.select %8, %10, %6 : vector<8x8xi1>, vector<8x8xi32>
    %12 = arith.index_cast %arg0 : i32 to index
    %13 = arith.index_cast %c0_i32 : i32 to index
    %14 = memref.load %arg2[%12, %13] : memref<2x2xf32, #tpu.memory_space<smem>>
    %15 = arith.cmpi eq, %1, %11 : vector<8x8xi32>
    %cst_1 = arith.constant 0.000000e+00 : f32
    %16 = vector.broadcast %14 : f32 to vector<8x8xf32>
    %17 = vector.broadcast %cst_1 : f32 to vector<8x8xf32>
    %18 = arith.select %15, %16, %17 : vector<8x8xi1>, vector<8x8xf32>
    %19 = arith.addf %2, %18 : vector<8x8xf32>
    %c1_i32 = arith.constant 1 : i32
    %20 = arith.index_cast %c1_i32 : i32 to index
    %21 = memref.load %arg1[%20] : memref<2xi32, #tpu.memory_space<smem>>
    %22 = vector.broadcast %21 : i32 to vector<8x8xi32>
    %23 = arith.addi %0, %22 : vector<8x8xi32>
    %c8_i32_2 = arith.constant 8 : i32
    %24 = vector.broadcast %c8_i32_2 : i32 to vector<8x8xi32>
    %25 = arith.cmpi sge, %23, %24 : vector<8x8xi32>
    %c8_i32_3 = arith.constant 8 : i32
    %26 = vector.broadcast %c8_i32_3 : i32 to vector<8x8xi32>
    %27 = arith.subi %23, %26 : vector<8x8xi32>
    %28 = arith.select %25, %27, %23 : vector<8x8xi1>, vector<8x8xi32>
    %29 = arith.index_cast %arg0 : i32 to index
    %30 = arith.index_cast %c1_i32 : i32 to index
    %31 = memref.load %arg2[%29, %30] : memref<2x2xf32, #tpu.memory_space<smem>>
    %32 = arith.cmpi eq, %1, %28 : vector<8x8xi32>
    %cst_4 = arith.constant 0.000000e+00 : f32
    %33 = vector.broadcast %31 : f32 to vector<8x8xf32>
    %34 = vector.broadcast %cst_4 : f32 to vector<8x8xf32>
    %35 = arith.select %32, %33, %34 : vector<8x8xi1>, vector<8x8xf32>
    %36 = arith.addf %19, %35 : vector<8x8xf32>
    %c2_i32 = arith.constant 2 : i32
    %c0 = arith.constant 0 : index
    %c0_5 = arith.constant 0 : index
    %c0_6 = arith.constant 0 : index
    %37 = vector.load %arg3[%c0, %c0_5, %c0_6] : memref<1x8x32xf32, #tpu.memory_space<vmem>>, vector<1x8x32xf32>
    %38 = vector.shape_cast %37 : vector<1x8x32xf32> to vector<8x32xf32>
    %cst_7 = arith.constant dense<0.000000e+00> : vector<8x32xf32>
    %39 = tpu.matmul %36, %38, %cst_7 {dimension_numbers = #tpu.dot_dimension_numbers<[1], [0], [0], [1], [0, 0, 1, 1], [], []>} : vector<8x8xf32>, vector<8x32xf32>, vector<8x32xf32> -> vector<8x32xf32>
    %c0_8 = arith.constant 0 : index
    %c0_9 = arith.constant 0 : index
    %c0_10 = arith.constant 0 : index
    %40 = vector.load %arg4[%c0_8, %c0_9, %c0_10] : memref<1x8x32xf32, #tpu.memory_space<vmem>>, vector<1x8x32xf32>
    %41 = vector.shape_cast %40 : vector<1x8x32xf32> to vector<8x32xf32>
    %42 = vector.shape_cast %39 : vector<8x32xf32> to vector<1x8x32xf32>
    tpu.vector_store %arg4[%c0_8, %c0_9, %c0_10], %42 {strides = array<i32>} : memref<1x8x32xf32, #tpu.memory_space<vmem>>, vector<1x8x32xf32>,
    return
  }
  func.func @transform_0(%arg0: i32, %arg1: memref<2xi32, #tpu.memory_space<smem>>, %arg2: memref<2x2xf32, #tpu.memory_space<smem>>) -> (i32, i32, i32) {
    %c0_i32 = arith.constant 0 : i32
    %c0_i32_0 = arith.constant 0 : i32
    %c0_i32_1 = arith.constant 0 : i32
    return %arg0, %c0_i32, %c0_i32_0 : i32, i32, i32
  }
  func.func @transform_1(%arg0: i32, %arg1: memref<2xi32, #tpu.memory_space<smem>>, %arg2: memref<2x2xf32, #tpu.memory_space<smem>>) -> (i32, i32, i32) {
    %c0_i32 = arith.constant 0 : i32
    %c0_i32_0 = arith.constant 0 : i32
    %c0_i32_1 = arith.constant 0 : i32
    return %arg0, %c0_i32, %c0_i32_0 : i32, i32, i32
  }
}

module attributes {stable_mosaic.version = 11 : i64} {
  func.func @_linear_kernel(%arg0: i32, %arg1: memref<16x32xf32, #tpu.memory_space<vmem>>, %arg2: memref<32x32xf32, #tpu.memory_space<vmem>>, %arg3: memref<1x32xf32, #tpu.memory_space<vmem>>, %arg4: memref<16x32xf32, #tpu.memory_space<vmem>>) attributes {dimension_semantics = [#tpu.dimension_semantics<parallel>], iteration_bounds = array<i64: 1>, scalar_prefetch = 0 : i64, scratch_operands = 0 : i64, tpu.core_type = #tpu.core_type<tc>, window_params = [{transform_indices = @transform_0, window_bounds = array<i64: 16, 32>}, {pipeline_mode = #tpu.pipeline_mode<synchronous>, transform_indices = @transform_1, window_bounds = array<i64: 32, 32>}, {pipeline_mode = #tpu.pipeline_mode<synchronous>, transform_indices = @transform_2, window_bounds = array<i64: 1, 32>}, {transform_indices = @transform_3, window_bounds = array<i64: 16, 32>}]} {
    %c0 = arith.constant 0 : index
    %c0_0 = arith.constant 0 : index
    %0 = vector.load %arg1[%c0, %c0_0] : memref<16x32xf32, #tpu.memory_space<vmem>>, vector<16x32xf32>
    %c0_1 = arith.constant 0 : index
    %c0_2 = arith.constant 0 : index
    %1 = vector.load %arg2[%c0_1, %c0_2] : memref<32x32xf32, #tpu.memory_space<vmem>>, vector<32x32xf32>
    %cst = arith.constant dense<0.000000e+00> : vector<16x32xf32>
    %2 = tpu.matmul %0, %1, %cst {dimension_numbers = #tpu.dot_dimension_numbers<[1], [0], [0], [1], [0, 0, 1, 1], [], []>} : vector<16x32xf32>, vector<32x32xf32>, vector<16x32xf32> -> vector<16x32xf32>
    %c0_3 = arith.constant 0 : index
    %c0_4 = arith.constant 0 : index
    %3 = vector.load %arg3[%c0_3, %c0_4] : memref<1x32xf32, #tpu.memory_space<vmem>>, vector<1x32xf32>
    %4 = vector.broadcast %3 : vector<1x32xf32> to vector<16x32xf32>
    %5 = arith.addf %2, %4 : vector<16x32xf32>
    %c0_5 = arith.constant 0 : index
    %c0_6 = arith.constant 0 : index
    %6 = vector.load %arg4[%c0_5, %c0_6] : memref<16x32xf32, #tpu.memory_space<vmem>>, vector<16x32xf32>
    tpu.vector_store %arg4[%c0_5, %c0_6], %5 {strides = array<i32>} : memref<16x32xf32, #tpu.memory_space<vmem>>, vector<16x32xf32>,
    return
  }
  func.func @transform_0(%arg0: i32) -> (i32, i32) {
    %c0_i32 = arith.constant 0 : i32
    %c0_i32_0 = arith.constant 0 : i32
    return %arg0, %c0_i32 : i32, i32
  }
  func.func @transform_1(%arg0: i32) -> (i32, i32) {
    %c0_i32 = arith.constant 0 : i32
    %c0_i32_0 = arith.constant 0 : i32
    %c0_i32_1 = arith.constant 0 : i32
    return %c0_i32, %c0_i32_0 : i32, i32
  }
  func.func @transform_2(%arg0: i32) -> (i32, i32) {
    %c0_i32 = arith.constant 0 : i32
    %c0_i32_0 = arith.constant 0 : i32
    %c0_i32_1 = arith.constant 0 : i32
    return %c0_i32, %c0_i32_0 : i32, i32
  }
  func.func @transform_3(%arg0: i32) -> (i32, i32) {
    %c0_i32 = arith.constant 0 : i32
    %c0_i32_0 = arith.constant 0 : i32
    return %arg0, %c0_i32 : i32, i32
  }
}

</mosaic_0001>

<llo_original>
// kernel: custom_multi_head_attention.5
$region0: #{custom_multi_head_attention.5}
  #allocation0 [shape = 'u32[]', space=smem, size = 0x4, offset = 0x4, fixed_abs, tag = 'smem constant byte address 0x4 - core index']
  #allocation1 [shape = 'u32[72,128]{1,0:T(1,128)}', space=vmem, size = 0x9000, scoped, tag = 'internal scratch']
  %s0 = inlined_call_operand.vmem [shape: f32[2,8,32], index: 0, kind: input, shape index: {}]
  %s1 = inlined_call_operand.vmem [shape: f32[2,8,32], index: 1, kind: input, shape index: {}]
  %s2 = inlined_call_operand.vmem [shape: f32[2,1,8], index: 2, kind: output, shape index: {}]
  %s3 = sld [smem:[#allocation0]]
  $region41: #{custom_multi_head_attention.5} parent=0
    _
  %s5 = ssub.s32 1, %s3
  %s6 = scalar_select 0, %s5, %s3
  loop: start=0, step=1, limit=4
  $region2: #{custom_multi_head_attention.5} parent=0 // loop_pre_header
    _
  $region3: #{custom_multi_head_attention.5} parent=0 // loop_header
    %s8 = sphi 0, %s12
    %p9 = scmp.ge.s32.totalorder %s8, 4
    %s18 = sphi 0, %s20
    %s21 = sphi 0, %s18
    %s22 = sphi 0, %s21
    %s38 = sphi 0, %s22
    %s44 = sphi 0, %s46
    %s47 = sphi 0, %s44
    %s48 = sphi 0, %s47
    %s64 = sphi 0, %s48
    %s70 = sphi 0, %s72
    %s73 = sphi 0, %s70
    %s74 = sphi 0, %s73
    %s90 = sphi 0, %s74
  $region4: #{custom_multi_head_attention.5} parent=0 // loop_header_branch
    %11 = sbr.rel (%p9) target = $region8
  $region5: #{custom_multi_head_attention.5} parent=0 // loop_body
    %s13 = ssub.s32 %s8, 1
    %s14 = ssub.s32 %s8, 2
    %s15 = sadd.s32 %s8, 1
    %s16 = ssub.s32 %s8, %s15
    %p17 = scmp.eq.s32.totalorder %s16, 0
    %s19 = sadd.s32 %s18, 1
    %s20 = scalar_select %p17, %s18, %s19
    %p23 = pneg %p17
    %p24 = scmp.eq.s32.totalorder %s8, 1
    %p25 = por %p23, %p24
    %p26 = scmp.ne.s32.totalorder %s18, %s21
    %p27 = scmp.eq.s32.totalorder %s8, 0
    %p28 = por %p26, %p27
    %p29 = scmp.ne.s32.totalorder %s18, %s21
    %p30 = scmp.eq.s32.totalorder %s13, 1
    %p31 = por %p29, %p30
    %p32 = scmp.ne.s32.totalorder %s21, %s22
    %p33 = scmp.eq.s32.totalorder %s13, 0
    %p34 = por %p32, %p33
    %p35 = scmp.ne.s32.totalorder %s21, %s22
    %p36 = scmp.eq.s32.totalorder %s14, 1
    %p37 = por %p35, %p36
    %p39 = scmp.ne.s32.totalorder %s22, %s38
    %p40 = scmp.eq.s32.totalorder %s14, 0
    %p41 = por %p39, %p40
    %s42 = ssub.s32 %s8, %s15
    %p43 = scmp.eq.s32.totalorder %s42, 0
    %s45 = sadd.s32 %s44, 1
    %s46 = scalar_select %p43, %s44, %s45
    %p49 = pneg %p43
    %p50 = scmp.eq.s32.totalorder %s8, 1
    %p51 = por %p49, %p50
    %p52 = scmp.ne.s32.totalorder %s44, %s47
    %p53 = scmp.eq.s32.totalorder %s8, 0
    %p54 = por %p52, %p53
    %p55 = scmp.ne.s32.totalorder %s44, %s47
    %p56 = scmp.eq.s32.totalorder %s13, 1
    %p57 = por %p55, %p56
    %p58 = scmp.ne.s32.totalorder %s47, %s48
    %p59 = scmp.eq.s32.totalorder %s13, 0
    %p60 = por %p58, %p59
    %p61 = scmp.ne.s32.totalorder %s47, %s48
    %p62 = scmp.eq.s32.totalorder %s14, 1
    %p63 = por %p61, %p62
    %p65 = scmp.ne.s32.totalorder %s48, %s64
    %p66 = scmp.eq.s32.totalorder %s14, 0
    %p67 = por %p65, %p66
    %s68 = ssub.s32 %s8, %s15
    %p69 = scmp.eq.s32.totalorder %s68, 0
    %s71 = sadd.s32 %s70, 1
    %s72 = scalar_select %p69, %s70, %s71
    %p75 = pneg %p69
    %p76 = scmp.eq.s32.totalorder %s8, 1
    %p77 = por %p75, %p76
    %p78 = scmp.ne.s32.totalorder %s70, %s73
    %p79 = scmp.eq.s32.totalorder %s8, 0
    %p80 = por %p78, %p79
    %p81 = scmp.ne.s32.totalorder %s70, %s73
    %p82 = scmp.eq.s32.totalorder %s13, 1
    %p83 = por %p81, %p82
    %p84 = scmp.ne.s32.totalorder %s73, %s74
    %p85 = scmp.eq.s32.totalorder %s13, 0
    %p86 = por %p84, %p85
    %p87 = scmp.ne.s32.totalorder %s73, %s74
    %p88 = scmp.eq.s32.totalorder %s14, 1
    %p89 = por %p87, %p88
    %p91 = scmp.ne.s32.totalorder %s74, %s90
    %p92 = scmp.eq.s32.totalorder %s14, 0
    %p93 = por %p91, %p92
    %p94 = scmp.le.s32.totalorder 1, %s8
    %p95 = scmp.lt.s32.totalorder %s8, 3
    %p96 = pnand %p94, %p95
    %p97 = pneg %p96
    // Predicated region
    $region9: #{custom_multi_head_attention.5} parent=5 // pred_check
      _
    $region10: #{custom_multi_head_attention.5} parent=5 // pred_check_branch
      %99 = sbr.rel (%p96) target = $region12
    $region11: #{custom_multi_head_attention.5} parent=5 // pred_region
      %s100 = ssub.s32 %s8, 1
    $region12: #{custom_multi_head_attention.5} parent=5 // pred_fallthru
      _
    %p101 = scmp.lt.s32.totalorder %s8, 2
    // Predicated region
    $region13: #{custom_multi_head_attention.5} parent=5 // pred_check
      %p102 = pneg %p101
    $region14: #{custom_multi_head_attention.5} parent=5 // pred_check_branch
      %104 = sbr.rel (%p102) target = $region16
    $region15: #{custom_multi_head_attention.5} parent=5 // pred_region
      // Predicated region
      $region17: #{custom_multi_head_attention.5} parent=15 // pred_check
        %p105 = pneg %p28
      $region18: #{custom_multi_head_attention.5} parent=15 // pred_check_branch
        %107 = sbr.rel (%p105) target = $region20
      $region19: #{custom_multi_head_attention.5} parent=15 // pred_region
        %p108 = scmp.lt.s32.totalorder %s8, 1
        %s109 = scalar_select %p108, %s8, 1
        %s110 = smul.addr %s109, 8
        %s111 = scalar_lea.vmem %s0, %s110
      $region20: #{custom_multi_head_attention.5} parent=15 // pred_fallthru
        _
      // Predicated region
      $region21: #{custom_multi_head_attention.5} parent=15 // pred_check
        %p112 = pneg %p54
      $region22: #{custom_multi_head_attention.5} parent=15 // pred_check_branch
        %114 = sbr.rel (%p112) target = $region24
      $region23: #{custom_multi_head_attention.5} parent=15 // pred_region
        %p115 = scmp.lt.s32.totalorder %s8, 1
        %s116 = scalar_select %p115, %s8, 1
        %s117 = smul.addr %s116, 8
        %s118 = scalar_lea.vmem %s1, %s117
      $region24: #{custom_multi_head_attention.5} parent=15 // pred_fallthru
        _
    $region16: #{custom_multi_head_attention.5} parent=5 // pred_fallthru
      _
    %p119 = scmp.le.s32.totalorder 1, %s8
    %p120 = scmp.lt.s32.totalorder %s8, 3
    %p121 = pnand %p119, %p120
    %p122 = pneg %p121
    // Predicated region
    $region25: #{custom_multi_head_attention.5} parent=5 // pred_check
      _
    $region26: #{custom_multi_head_attention.5} parent=5 // pred_check_branch
      %124 = sbr.rel (%p121) target = $region28
    $region27: #{custom_multi_head_attention.5} parent=5 // pred_region
      %s125 = ssub.s32 %s8, 1
      %p126 = scmp.lt.s32.totalorder %s13, 1
      %s127 = scalar_select %p126, %s13, 1
      %s128 = smul.addr %s127, 8
      %s129 = scalar_lea.vmem %s0, %s128
      %p130 = pneg %p34
      %p131 = pneg %p31
      %p132 = scmp.lt.s32.totalorder %s13, 1
      %s133 = scalar_select %p132, %s13, 1
      %s134 = smul.addr %s133, 8
      %s135 = scalar_lea.vmem %s1, %s134
      %p136 = pneg %p60
      %p137 = pneg %p57
      %p138 = pneg %p86
      %p139 = pneg %p83
      %p140 = scmp.lt.s32.totalorder %s13, 1
      %s141 = scalar_select %p140, %s13, 1
      %s142 = scalar_lea.vmem %s2, %s141
      %p143 = scmp.lt.s32.totalorder %s13, 1
      %s144 = scalar_select %p143, %s13, 1
      %s145 = smul.addr %s144, 8
      %s146 = scalar_lea.vmem %s0, %s145
      %p147 = scmp.lt.s32.totalorder %s13, 1
      %s148 = scalar_select %p147, %s13, 1
      %s149 = smul.addr %s148, 8
      %s150 = scalar_lea.vmem %s1, %s149
      %p151 = scmp.lt.s32.totalorder %s13, 1
      %s152 = scalar_select %p151, %s13, 1
      %s153 = scalar_lea.vmem %s2, %s152
      %v154 = vld [vmem:[%s146] sm:$0xff]
      %v155 = vld [vmem:[%s150] sm:$0xff]
      %vm156 = vcmask 261120
      %v158 = vsel %vm156, %v154, 0
      %v161 = vsel %vm156, %v155, 0
      %163 = vmatpush.xpose.msra.mxu0 0.0
      %164 = vmatpush.xpose.msra.mxu0 0.0
      %165 = vmatpush.xpose.msra.mxu0 0.0
      %166 = vmatpush.xpose.msra.mxu0 0.0
      %167 = vmatpush.xpose.msra.mxu0 0.0
      %168 = vmatpush.xpose.msra.mxu0 0.0
      %169 = vmatpush.xpose.msra.mxu0 0.0
      %170 = vmatpush.xpose.msra.mxu0 0.0
      %171 = vmatpush.xpose.msra.mxu0 0.0
      %172 = vmatpush.xpose.msra.mxu0 0.0
      %173 = vmatpush.xpose.msra.mxu0 0.0
      %174 = vmatpush.xpose.msra.mxu0 0.0
      %175 = vmatpush.xpose.msra.mxu0 0.0
      %176 = vmatpush.xpose.msra.mxu0 0.0
      %177 = vmatpush.xpose.msra.mxu0 0.0
      %178 = vmatpush.xpose.msra.mxu0 %v161
      %179 = vmatmul.f32.gmra.mxu0 %v158
      %v180 = vpop.f32.mrf.mxu0
      %v181 = vadd.f32 0.0, %v180
      %182 = vdwg.mxu0
      %v183 = vlaneseq
      %v184 = vshrl.u32 %v183, 7
      %v185 = vlaneseq
      %v186 = vand.u32 %v185, 127
      %v187 = vsub.s32 %v184, %v186
      %vm188 = vcmp.lt.s32.totalorder %v187, 0
      %v189 = vadd.s32 %v187, 8
      %v190 = vsel %vm188, %v189, %v187
      %vm191 = vcmp.eq.s32.totalorder %v190, 0
      %v192 = vsel %vm191, %v181, 0.0
      %vm193 = vcmask 64512
      %v194 = vsel %vm193, %v192, 0.0
      %195 = vadd.xlane.f32.xlu0 %v194
      %v196 = vpop.xlane.xlu0 %195
      %v197 = vrot.slane %v196, 4
      %v198 = vadd.f32 %v196, %v197
      %v199 = vrot.slane %v198, 2
      %v200 = vadd.f32 %v198, %v199
      %v201 = vrot.slane %v200, 1
      %v202 = vadd.f32 %v200, %v201
      %s203 = vtos %v202
      %vm204 = vcmp.eq.s32.totalorder %v186, 0
      %v205 = vstv %s203
      %v206 = vsel %vm204, %v205, 0.0
      %v207 = vadd.f32 %v206, 0.0
      %vm208 = vcmp.eq.s32.totalorder %v190, 1
      %v209 = vsel %vm208, %v181, 0.0
      %v210 = vsel %vm193, %v209, 0.0
      %211 = vadd.xlane.f32.xlu0 %v210
      %v212 = vpop.xlane.xlu0 %211
      %v213 = vrot.slane %v212, 4
      %v214 = vadd.f32 %v212, %v213
      %v215 = vrot.slane %v214, 2
      %v216 = vadd.f32 %v214, %v215
      %v217 = vrot.slane %v216, 1
      %v218 = vadd.f32 %v216, %v217
      %s219 = vtos %v218
      %vm220 = vcmp.eq.s32.totalorder %v186, 1
      %v221 = vstv %s219
      %v222 = vsel %vm220, %v221, 0.0
      %v223 = vadd.f32 %v207, %v222
      %vm224 = vcmp.eq.s32.totalorder %v190, 2
      %v225 = vsel %vm224, %v181, 0.0
      %v226 = vsel %vm193, %v225, 0.0
      %227 = vadd.xlane.f32.xlu0 %v226
      %v228 = vpop.xlane.xlu0 %227
      %v229 = vrot.slane %v228, 4
      %v230 = vadd.f32 %v228, %v229
      %v231 = vrot.slane %v230, 2
      %v232 = vadd.f32 %v230, %v231
      %v233 = vrot.slane %v232, 1
      %v234 = vadd.f32 %v232, %v233
      %s235 = vtos %v234
      %vm236 = vcmp.eq.s32.totalorder %v186, 2
      %v237 = vstv %s235
      %v238 = vsel %vm236, %v237, 0.0
      %v239 = vadd.f32 %v223, %v238
      %vm240 = vcmp.eq.s32.totalorder %v190, 3
      %v241 = vsel %vm240, %v181, 0.0
      %v242 = vsel %vm193, %v241, 0.0
      %243 = vadd.xlane.f32.xlu0 %v242
      %v244 = vpop.xlane.xlu0 %243
      %v245 = vrot.slane %v244, 4
      %v246 = vadd.f32 %v244, %v245
      %v247 = vrot.slane %v246, 2
      %v248 = vadd.f32 %v246, %v247
      %v249 = vrot.slane %v248, 1
      %v250 = vadd.f32 %v248, %v249
      %s251 = vtos %v250
      %vm252 = vcmp.eq.s32.totalorder %v186, 3
      %v253 = vstv %s251
      %v254 = vsel %vm252, %v253, 0.0
      %v255 = vadd.f32 %v239, %v254
      %vm256 = vcmp.eq.s32.totalorder %v190, 4
      %v257 = vsel %vm256, %v181, 0.0
      %v258 = vsel %vm193, %v257, 0.0
      %259 = vadd.xlane.f32.xlu0 %v258
      %v260 = vpop.xlane.xlu0 %259
      %v261 = vrot.slane %v260, 4
      %v262 = vadd.f32 %v260, %v261
      %v263 = vrot.slane %v262, 2
      %v264 = vadd.f32 %v262, %v263
      %v265 = vrot.slane %v264, 1
      %v266 = vadd.f32 %v264, %v265
      %s267 = vtos %v266
      %vm268 = vcmp.eq.s32.totalorder %v186, 4
      %v269 = vstv %s267
      %v270 = vsel %vm268, %v269, 0.0
      %v271 = vadd.f32 %v255, %v270
      %vm272 = vcmp.eq.s32.totalorder %v190, 5
      %v273 = vsel %vm272, %v181, 0.0
      %v274 = vsel %vm193, %v273, 0.0
      %275 = vadd.xlane.f32.xlu0 %v274
      %v276 = vpop.xlane.xlu0 %275
      %v277 = vrot.slane %v276, 4
      %v278 = vadd.f32 %v276, %v277
      %v279 = vrot.slane %v278, 2
      %v280 = vadd.f32 %v278, %v279
      %v281 = vrot.slane %v280, 1
      %v282 = vadd.f32 %v280, %v281
      %s283 = vtos %v282
      %vm284 = vcmp.eq.s32.totalorder %v186, 5
      %v285 = vstv %s283
      %v286 = vsel %vm284, %v285, 0.0
      %v287 = vadd.f32 %v271, %v286
      %vm288 = vcmp.eq.s32.totalorder %v190, 6
      %v289 = vsel %vm288, %v181, 0.0
      %v290 = vsel %vm193, %v289, 0.0
      %291 = vadd.xlane.f32.xlu0 %v290
      %v292 = vpop.xlane.xlu0 %291
      %v293 = vrot.slane %v292, 4
      %v294 = vadd.f32 %v292, %v293
      %v295 = vrot.slane %v294, 2
      %v296 = vadd.f32 %v294, %v295
      %v297 = vrot.slane %v296, 1
      %v298 = vadd.f32 %v296, %v297
      %s299 = vtos %v298
      %vm300 = vcmp.eq.s32.totalorder %v186, 6
      %v301 = vstv %s299
      %v302 = vsel %vm300, %v301, 0.0
      %v303 = vadd.f32 %v287, %v302
      %vm304 = vcmp.eq.s32.totalorder %v190, 7
      %v305 = vsel %vm304, %v181, 0.0
      %v306 = vsel %vm193, %v305, 0.0
      %307 = vadd.xlane.f32.xlu0 %v306
      %v308 = vpop.xlane.xlu0 %307
      %v309 = vrot.slane %v308, 4
      %v310 = vadd.f32 %v308, %v309
      %v311 = vrot.slane %v310, 2
      %v312 = vadd.f32 %v310, %v311
      %v313 = vrot.slane %v312, 1
      %v314 = vadd.f32 %v312, %v313
      %s315 = vtos %v314
      %vm316 = vcmp.eq.s32.totalorder %v186, 7
      %v317 = vstv %s315
      %v318 = vsel %vm316, %v317, 0.0
      %v319 = vadd.f32 %v303, %v318
      %v320 = vmul.f32 %v319, 0.03125
      %vm321 = vcmask 57344
      %322 = vst.msk [vmem:[%s153] sm:$0x1] %vm321, %v320
      %p323 = scmp.lt.s32.totalorder %s13, 1
      %s324 = scalar_select %p323, %s13, 1
      %s325 = scalar_lea.vmem %s2, %s324
      // Predicated region
      $region29: #{custom_multi_head_attention.5} parent=27 // pred_check
        %p326 = pneg %p83
      $region30: #{custom_multi_head_attention.5} parent=27 // pred_check_branch
        %328 = sbr.rel (%p326) target = $region32
      $region31: #{custom_multi_head_attention.5} parent=27 // pred_region
        _
      $region32: #{custom_multi_head_attention.5} parent=27 // pred_fallthru
        _
    $region28: #{custom_multi_head_attention.5} parent=5 // pred_fallthru
      _
    %p329 = scmp.le.s32.totalorder 2, %s8
    // Predicated region
    $region33: #{custom_multi_head_attention.5} parent=5 // pred_check
      %p330 = pneg %p329
    $region34: #{custom_multi_head_attention.5} parent=5 // pred_check_branch
      %332 = sbr.rel (%p330) target = $region36
    $region35: #{custom_multi_head_attention.5} parent=5 // pred_region
      %s333 = ssub.s32 %s8, 2
      // Predicated region
      $region37: #{custom_multi_head_attention.5} parent=35 // pred_check
        %p334 = pneg %p89
      $region38: #{custom_multi_head_attention.5} parent=35 // pred_check_branch
        %336 = sbr.rel (%p334) target = $region40
      $region39: #{custom_multi_head_attention.5} parent=35 // pred_region
        %p337 = scmp.lt.s32.totalorder %s14, 1
        %s338 = scalar_select %p337, %s14, 1
        %s339 = scalar_lea.vmem %s2, %s338
      $region40: #{custom_multi_head_attention.5} parent=35 // pred_fallthru
        _
    $region36: #{custom_multi_head_attention.5} parent=5 // pred_fallthru
      _
  $region6: #{custom_multi_head_attention.5} parent=0 // loop_footer
    %s12 = sadd.s32 1, %s8
  $region7: #{custom_multi_head_attention.5} parent=0 // loop_footer_branch
    %7 = sbr.rel target = $region3
  $region8: #{custom_multi_head_attention.5} parent=0 // loop_exit
    _

// kernel: custom_multi_head_attention.4
$region0: #{custom_multi_head_attention.4}
  #allocation0 [shape = 'u32[]', space=smem, size = 0x4, offset = 0x4, fixed_abs, tag = 'smem constant byte address 0x4 - core index']
  #allocation1 [shape = 'u32[72,128]{1,0:T(1,128)}', space=vmem, size = 0x9000, scoped, tag = 'internal scratch']
  %s0 = inlined_call_operand.hbm [shape: f32[16,32], index: 0, kind: input, shape index: {}]
  %s1 = inlined_call_operand.hbm [shape: f32[16,32], index: 1, kind: input, shape index: {}]
  %s2 = inlined_call_operand.hbm [shape: f32[16,32], index: 2, kind: input, shape index: {}]
  %s3 = inlined_call_operand.hbm [shape: f32[32,32], index: 3, kind: input, shape index: {}]
  %s4 = inlined_call_operand.hbm [shape: f32[32,32], index: 4, kind: input, shape index: {}]
  %s5 = inlined_call_operand.hbm [shape: f32[32,32], index: 5, kind: input, shape index: {}]
  %s6 = inlined_call_operand.vmem [shape: f32[3,32], index: 6, kind: input, shape index: {}]
  %s7 = inlined_call_operand.vmem [shape: f32[16,32], index: 7, kind: output, shape index: {0}]
  %s8 = inlined_call_operand.vmem [shape: f32[16,32], index: 8, kind: output, shape index: {1}]
  %s9 = inlined_call_operand.vmem [shape: f32[16,32], index: 9, kind: output, shape index: {2}]
  %10 = xla_tuple %s7, %s8, %s9
  %s11 = sld [smem:[#allocation0]]
  $region78: #{custom_multi_head_attention.4} parent=0
    _
  %s13 = ssub.s32 1, %s11
  %s14 = scalar_select 0, %s13, %s11
  $region1: #{custom_multi_head_attention.4} parent=0
    #allocation2 [shape = 'u8[8192]{0}', space=vmem, size = 0x2000, scoped, tag = 'input window, operand 0, single buffered']
    #allocation3 [shape = 's32[1]{0}', space=sflag, size = 0x4, scoped, tag = 'scoped memory for custom_multi_head_attention.4']
    #allocation4 [shape = 'u8[8192]{0}', space=vmem, size = 0x2000, scoped, tag = 'input window, operand 1, single buffered']
    #allocation5 [shape = 's32[1]{0}', space=sflag, size = 0x4, scoped, tag = 'scoped memory for custom_multi_head_attention.4']
    #allocation6 [shape = 'u8[8192]{0}', space=vmem, size = 0x2000, scoped, tag = 'input window, operand 2, single buffered']
    #allocation7 [shape = 'u8[16384]{0}', space=vmem, size = 0x4000, scoped, tag = 'input window, operand 3, single buffered']
    #allocation8 [shape = 's32[1]{0}', space=sflag, size = 0x4, scoped, tag = 'scoped memory for custom_multi_head_attention.4']
    #allocation9 [shape = 'u8[16384]{0}', space=vmem, size = 0x4000, scoped, tag = 'input window, operand 4, single buffered']
    #allocation10 [shape = 'u8[16384]{0}', space=vmem, size = 0x4000, scoped, tag = 'input window, operand 5, single buffered']
    #allocation11 [shape = 's32[1]{0}', space=sflag, size = 0x4, scoped, tag = 'scoped memory for custom_multi_head_attention.4']
    %15 = vsyncpa [#allocation3], 0
    %16 = vsyncpa [#allocation5], 0
    %17 = vsyncpa [#allocation8], 0
    %18 = vsyncpa [#allocation11], 0
    // Predicated region
    $region2: #{custom_multi_head_attention.4} parent=1 // pred_check
      _
    $region3: #{custom_multi_head_attention.4} parent=1 // pred_check_branch
      %20 = sbr.rel (0) target = $region5
    $region4: #{custom_multi_head_attention.4} parent=1 // pred_region
      %22 = vsyncadd [#allocation3], 0
      %s23 = sshll.u32 %s0, 4
      %s24 = int_to_ptr.hbm [resolvable:$true] %s23
      %s25 = sshll.u32 [#allocation2], 4
      %s26 = int_to_ptr.vmem [resolvable:$true] %s25
      %31 = dma.hbm_to_vmem [thread:$0]  %s24, 256, %s26, [#allocation3], 128, 128, 8
    $region5: #{custom_multi_head_attention.4} parent=1 // pred_fallthru
      _
    // Predicated region
    $region6: #{custom_multi_head_attention.4} parent=1 // pred_check
      _
    $region7: #{custom_multi_head_attention.4} parent=1 // pred_check_branch
      %33 = sbr.rel (0) target = $region9
    $region8: #{custom_multi_head_attention.4} parent=1 // pred_region
      %35 = vsyncadd [#allocation5], 0
      %s36 = sshll.u32 %s1, 4
      %s37 = int_to_ptr.hbm [resolvable:$true] %s36
      %s38 = sshll.u32 [#allocation4], 4
      %s39 = int_to_ptr.vmem [resolvable:$true] %s38
      %44 = dma.hbm_to_vmem [thread:$0]  %s37, 256, %s39, [#allocation5], 128, 128, 8
    $region9: #{custom_multi_head_attention.4} parent=1 // pred_fallthru
      _
    // Predicated region
    $region10: #{custom_multi_head_attention.4} parent=1 // pred_check
      _
    $region11: #{custom_multi_head_attention.4} parent=1 // pred_check_branch
      %46 = sbr.rel (0) target = $region13
    $region12: #{custom_multi_head_attention.4} parent=1 // pred_region
      %48 = vsyncadd [#allocation5], 0
      %s49 = sshll.u32 %s2, 4
      %s50 = int_to_ptr.hbm [resolvable:$true] %s49
      %s51 = sshll.u32 [#allocation6], 4
      %s52 = int_to_ptr.vmem [resolvable:$true] %s51
      %57 = dma.hbm_to_vmem [thread:$0]  %s50, 256, %s52, [#allocation5], 128, 128, 8
    $region13: #{custom_multi_head_attention.4} parent=1 // pred_fallthru
      _
    // Predicated region
    $region14: #{custom_multi_head_attention.4} parent=1 // pred_check
      _
    $region15: #{custom_multi_head_attention.4} parent=1 // pred_check_branch
      %59 = sbr.rel (0) target = $region17
    $region16: #{custom_multi_head_attention.4} parent=1 // pred_region
      %61 = vsyncadd [#allocation8], 0
      %s62 = sshll.u32 %s3, 4
      %s63 = int_to_ptr.hbm [resolvable:$true] %s62
      %s64 = sshll.u32 [#allocation7], 4
      %s65 = int_to_ptr.vmem [resolvable:$true] %s64
      %70 = dma.hbm_to_vmem [thread:$0]  %s63, 512, %s65, [#allocation8], 128, 128, 8
    $region17: #{custom_multi_head_attention.4} parent=1 // pred_fallthru
      _
    // Predicated region
    $region18: #{custom_multi_head_attention.4} parent=1 // pred_check
      _
    $region19: #{custom_multi_head_attention.4} parent=1 // pred_check_branch
      %72 = sbr.rel (0) target = $region21
    $region20: #{custom_multi_head_attention.4} parent=1 // pred_region
      %74 = vsyncadd [#allocation8], 0
      %s75 = sshll.u32 %s4, 4
      %s76 = int_to_ptr.hbm [resolvable:$true] %s75
      %s77 = sshll.u32 [#allocation9], 4
      %s78 = int_to_ptr.vmem [resolvable:$true] %s77
      %83 = dma.hbm_to_vmem [thread:$0]  %s76, 512, %s78, [#allocation8], 128, 128, 8
    $region21: #{custom_multi_head_attention.4} parent=1 // pred_fallthru
      _
    // Predicated region
    $region22: #{custom_multi_head_attention.4} parent=1 // pred_check
      _
    $region23: #{custom_multi_head_attention.4} parent=1 // pred_check_branch
      %85 = sbr.rel (0) target = $region25
    $region24: #{custom_multi_head_attention.4} parent=1 // pred_region
      %87 = vsyncadd [#allocation11], 0
      %s88 = sshll.u32 %s5, 4
      %s89 = int_to_ptr.hbm [resolvable:$true] %s88
      %s90 = sshll.u32 [#allocation10], 4
      %s91 = int_to_ptr.vmem [resolvable:$true] %s90
      %96 = dma.hbm_to_vmem [thread:$0]  %s89, 512, %s91, [#allocation11], 128, 128, 8
    $region25: #{custom_multi_head_attention.4} parent=1 // pred_fallthru
      _
    // Predicated region
    $region26: #{custom_multi_head_attention.4} parent=1 // pred_check
      _
    $region27: #{custom_multi_head_attention.4} parent=1 // pred_check_branch
      %98 = sbr.rel (0) target = $region29
    $region28: #{custom_multi_head_attention.4} parent=1 // pred_region
      _
    $region29: #{custom_multi_head_attention.4} parent=1 // pred_fallthru
      _
    // Predicated region
    $region30: #{custom_multi_head_attention.4} parent=1 // pred_check
      _
    $region31: #{custom_multi_head_attention.4} parent=1 // pred_check_branch
      %100 = sbr.rel (0) target = $region33
    $region32: #{custom_multi_head_attention.4} parent=1 // pred_region
      %102 = dma.done [#allocation3], 256
    $region33: #{custom_multi_head_attention.4} parent=1 // pred_fallthru
      _
    // Predicated region
    $region34: #{custom_multi_head_attention.4} parent=1 // pred_check
      _
    $region35: #{custom_multi_head_attention.4} parent=1 // pred_check_branch
      %104 = sbr.rel (0) target = $region37
    $region36: #{custom_multi_head_attention.4} parent=1 // pred_region
      %106 = dma.done [#allocation5], 256
    $region37: #{custom_multi_head_attention.4} parent=1 // pred_fallthru
      _
    // Predicated region
    $region38: #{custom_multi_head_attention.4} parent=1 // pred_check
      _
    $region39: #{custom_multi_head_attention.4} parent=1 // pred_check_branch
      %108 = sbr.rel (0) target = $region41
    $region40: #{custom_multi_head_attention.4} parent=1 // pred_region
      %110 = dma.done [#allocation5], 256
    $region41: #{custom_multi_head_attention.4} parent=1 // pred_fallthru
      _
    // Predicated region
    $region42: #{custom_multi_head_attention.4} parent=1 // pred_check
      _
    $region43: #{custom_multi_head_attention.4} parent=1 // pred_check_branch
      %112 = sbr.rel (0) target = $region45
    $region44: #{custom_multi_head_attention.4} parent=1 // pred_region
      %114 = dma.done [#allocation8], 512
    $region45: #{custom_multi_head_attention.4} parent=1 // pred_fallthru
      _
    // Predicated region
    $region46: #{custom_multi_head_attention.4} parent=1 // pred_check
      _
    $region47: #{custom_multi_head_attention.4} parent=1 // pred_check_branch
      %116 = sbr.rel (0) target = $region49
    $region48: #{custom_multi_head_attention.4} parent=1 // pred_region
      %118 = dma.done [#allocation8], 512
    $region49: #{custom_multi_head_attention.4} parent=1 // pred_fallthru
      _
    // Predicated region
    $region50: #{custom_multi_head_attention.4} parent=1 // pred_check
      _
    $region51: #{custom_multi_head_attention.4} parent=1 // pred_check_branch
      %120 = sbr.rel (0) target = $region53
    $region52: #{custom_multi_head_attention.4} parent=1 // pred_region
      %122 = dma.done [#allocation11], 512
    $region53: #{custom_multi_head_attention.4} parent=1 // pred_fallthru
      _
    %v123 = vld [vmem:[#allocation2] sm:$0xff]
    %v124 = vld [vmem:[#allocation2 + $0x8] sm:$0xff]
    %v125 = vld [vmem:[#allocation7] sm:$0xff]
    %v126 = vld [vmem:[#allocation7 + $0x8] sm:$0xff]
    %v127 = vld [vmem:[#allocation7 + $0x10] sm:$0xff]
    %v128 = vld [vmem:[#allocation7 + $0x18] sm:$0xff]
    %v129 = vld [vmem:[%s6] sm:$0x1]
    %v130 = vperm.slane %v129, 0
    %vm131 = vcmask 261120
    %v133 = vsel %vm131, %v123, 0
    %v136 = vsel %vm131, %v124, 0
    %138 = vmatpush.msra.mxu0 0.0
    %139 = vmatpush.msra.mxu0 0.0
    %140 = vmatpush.msra.mxu0 0.0
    %141 = vmatpush.msra.mxu0 0.0
    %142 = vmatpush.msra.mxu0 0.0
    %143 = vmatpush.msra.mxu0 0.0
    %144 = vmatpush.msra.mxu0 0.0
    %145 = vmatpush.msra.mxu0 0.0
    %146 = vmatpush.msra.mxu0 0.0
    %147 = vmatpush.msra.mxu0 0.0
    %148 = vmatpush.msra.mxu0 0.0
    %149 = vmatpush.msra.mxu0 0.0
    %150 = vmatpush.msra.mxu0 %v128
    %151 = vmatpush.msra.mxu0 %v127
    %152 = vmatpush.msra.mxu0 %v126
    %153 = vmatpush.msra.mxu0 %v125
    %154 = vmatmul.f32.gmra.mxu0 %v133
    %v155 = vpop.f32.mrf.mxu0
    %v156 = vadd.f32 %v130, %v155
    %157 = vmatmul.f32.gmra.mxu0 %v136
    %v158 = vpop.f32.mrf.mxu0
    %v159 = vadd.f32 %v130, %v158
    %160 = vdwg.mxu0
    %161 = vst.msk [vmem:[%s7] sm:$0xff] %vm131, %v156
    %162 = vst.msk [vmem:[%s7 + $0x8] sm:$0xff] %vm131, %v159
    %v163 = vld [vmem:[#allocation4] sm:$0xff]
    %v164 = vld [vmem:[#allocation4 + $0x8] sm:$0xff]
    %v165 = vld [vmem:[#allocation9] sm:$0xff]
    %v166 = vld [vmem:[#allocation9 + $0x8] sm:$0xff]
    %v167 = vld [vmem:[#allocation9 + $0x10] sm:$0xff]
    %v168 = vld [vmem:[#allocation9 + $0x18] sm:$0xff]
    %v169 = vld [vmem:[%s6 + $0x1] sm:$0x1]
    %v170 = vperm.slane %v169, 0
    %v172 = vsel %vm131, %v163, 0
    %v175 = vsel %vm131, %v164, 0
    %177 = vmatpush.msra.mxu0 0.0
    %178 = vmatpush.msra.mxu0 0.0
    %179 = vmatpush.msra.mxu0 0.0
    %180 = vmatpush.msra.mxu0 0.0
    %181 = vmatpush.msra.mxu0 0.0
    %182 = vmatpush.msra.mxu0 0.0
    %183 = vmatpush.msra.mxu0 0.0
    %184 = vmatpush.msra.mxu0 0.0
    %185 = vmatpush.msra.mxu0 0.0
    %186 = vmatpush.msra.mxu0 0.0
    %187 = vmatpush.msra.mxu0 0.0
    %188 = vmatpush.msra.mxu0 0.0
    %189 = vmatpush.msra.mxu0 %v168
    %190 = vmatpush.msra.mxu0 %v167
    %191 = vmatpush.msra.mxu0 %v166
    %192 = vmatpush.msra.mxu0 %v165
    %193 = vmatmul.f32.gmra.mxu0 %v172
    %v194 = vpop.f32.mrf.mxu0
    %v195 = vadd.f32 %v170, %v194
    %196 = vmatmul.f32.gmra.mxu0 %v175
    %v197 = vpop.f32.mrf.mxu0
    %v198 = vadd.f32 %v170, %v197
    %199 = vdwg.mxu0
    %200 = vst.msk [vmem:[%s8] sm:$0xff] %vm131, %v195
    %201 = vst.msk [vmem:[%s8 + $0x8] sm:$0xff] %vm131, %v198
    %v202 = vld [vmem:[#allocation6] sm:$0xff]
    %v203 = vld [vmem:[#allocation6 + $0x8] sm:$0xff]
    %v204 = vld [vmem:[#allocation10] sm:$0xff]
    %v205 = vld [vmem:[#allocation10 + $0x8] sm:$0xff]
    %v206 = vld [vmem:[#allocation10 + $0x10] sm:$0xff]
    %v207 = vld [vmem:[#allocation10 + $0x18] sm:$0xff]
    %v208 = vld [vmem:[%s6 + $0x2] sm:$0x1]
    %v209 = vperm.slane %v208, 0
    %v211 = vsel %vm131, %v202, 0
    %v214 = vsel %vm131, %v203, 0
    %216 = vmatpush.msra.mxu0 0.0
    %217 = vmatpush.msra.mxu0 0.0
    %218 = vmatpush.msra.mxu0 0.0
    %219 = vmatpush.msra.mxu0 0.0
    %220 = vmatpush.msra.mxu0 0.0
    %221 = vmatpush.msra.mxu0 0.0
    %222 = vmatpush.msra.mxu0 0.0
    %223 = vmatpush.msra.mxu0 0.0
    %224 = vmatpush.msra.mxu0 0.0
    %225 = vmatpush.msra.mxu0 0.0
    %226 = vmatpush.msra.mxu0 0.0
    %227 = vmatpush.msra.mxu0 0.0
    %228 = vmatpush.msra.mxu0 %v207
    %229 = vmatpush.msra.mxu0 %v206
    %230 = vmatpush.msra.mxu0 %v205
    %231 = vmatpush.msra.mxu0 %v204
    %232 = vmatmul.f32.gmra.mxu0 %v211
    %v233 = vpop.f32.mrf.mxu0
    %v234 = vadd.f32 %v209, %v233
    %235 = vmatmul.f32.gmra.mxu0 %v214
    %v236 = vpop.f32.mrf.mxu0
    %v237 = vadd.f32 %v209, %v236
    %238 = vdwg.mxu0
    %239 = vst.msk [vmem:[%s9] sm:$0xff] %vm131, %v234
    %240 = vst.msk [vmem:[%s9 + $0x8] sm:$0xff] %vm131, %v237
    // Predicated region
    $region54: #{custom_multi_head_attention.4} parent=1 // pred_check
      _
    $region55: #{custom_multi_head_attention.4} parent=1 // pred_check_branch
      %242 = sbr.rel (0) target = $region57
    $region56: #{custom_multi_head_attention.4} parent=1 // pred_region
      _
    $region57: #{custom_multi_head_attention.4} parent=1 // pred_fallthru
      _
    // Predicated region
    $region58: #{custom_multi_head_attention.4} parent=1 // pred_check
      _
    $region59: #{custom_multi_head_attention.4} parent=1 // pred_check_branch
      %244 = sbr.rel (0) target = $region61
    $region60: #{custom_multi_head_attention.4} parent=1 // pred_region
      _
    $region61: #{custom_multi_head_attention.4} parent=1 // pred_fallthru
      _
    // Predicated region
    $region62: #{custom_multi_head_attention.4} parent=1 // pred_check
      _
    $region63: #{custom_multi_head_attention.4} parent=1 // pred_check_branch
      %246 = sbr.rel (0) target = $region65
    $region64: #{custom_multi_head_attention.4} parent=1 // pred_region
      _
    $region65: #{custom_multi_head_attention.4} parent=1 // pred_fallthru
      _
    // Predicated region
    $region66: #{custom_multi_head_attention.4} parent=1 // pred_check
      _
    $region67: #{custom_multi_head_attention.4} parent=1 // pred_check_branch
      %248 = sbr.rel (0) target = $region69
    $region68: #{custom_multi_head_attention.4} parent=1 // pred_region
      _
    $region69: #{custom_multi_head_attention.4} parent=1 // pred_fallthru
      _
    // Predicated region
    $region70: #{custom_multi_head_attention.4} parent=1 // pred_check
      _
    $region71: #{custom_multi_head_attention.4} parent=1 // pred_check_branch
      %250 = sbr.rel (0) target = $region73
    $region72: #{custom_multi_head_attention.4} parent=1 // pred_region
      _
    $region73: #{custom_multi_head_attention.4} parent=1 // pred_fallthru
      _
    // Predicated region
    $region74: #{custom_multi_head_attention.4} parent=1 // pred_check
      _
    $region75: #{custom_multi_head_attention.4} parent=1 // pred_check_branch
      %252 = sbr.rel (0) target = $region77
    $region76: #{custom_multi_head_attention.4} parent=1 // pred_region
      _
    $region77: #{custom_multi_head_attention.4} parent=1 // pred_fallthru
      _
    %253 = vsyncpa [#allocation3], 1
    %254 = vsyncpa [#allocation5], 1
    %255 = vsyncpa [#allocation8], 1
    %256 = vsyncpa [#allocation11], 1

// kernel: custom_multi_head_attention.6
$region0: #{custom_multi_head_attention.6}
  #allocation0 [shape = 'u32[]', space=smem, size = 0x4, offset = 0x4, fixed_abs, tag = 'smem constant byte address 0x4 - core index']
  #allocation1 [shape = 'u32[72,128]{1,0:T(1,128)}', space=vmem, size = 0x9000, scoped, tag = 'internal scratch']
  #allocation2 [shape = 's32[1]{0}', space=sflag, size = 0x4, scoped, tag = 'scoped memory for custom_multi_head_attention.6']
  #allocation3 [shape = 'u8[512]{0}', space=smem, size = 0x200, scoped, tag = 'prefetched SMEM operand 0']
  #allocation4 [shape = 'u8[1024]{0}', space=smem, size = 0x400, scoped, tag = 'prefetched SMEM operand 1']
  %s0 = inlined_call_operand.vmem [shape: s32[2], index: 0, kind: input, shape index: {}]
  %s1 = inlined_call_operand.vmem [shape: f32[2,2], index: 1, kind: input, shape index: {}]
  %s2 = inlined_call_operand.vmem [shape: f32[2,8,32], index: 2, kind: input, shape index: {}]
  %s3 = inlined_call_operand.vmem [shape: f32[2,8,32], index: 3, kind: output, shape index: {}]
  %s4 = sld [smem:[#allocation0]]
  $region37: #{custom_multi_head_attention.6} parent=0
    _
  %s6 = ssub.s32 1, %s4
  %s7 = scalar_select 0, %s6, %s4
  %s9 = sshll.u32 %s0, 4
  %s10 = int_to_ptr.vmem [resolvable:$true] %s9
  %12 = dma.vmem_to_smem %s10, 16, [#allocation3], [#allocation2]
  %s14 = sshll.u32 %s1, 4
  %s15 = int_to_ptr.vmem [resolvable:$true] %s14
  %17 = dma.vmem_to_smem %s15, 32, [#allocation4], [#allocation2]
  %19 = dma.done [#allocation2], 48
  %20 = sfence
  loop: start=0, step=1, limit=4
  $region2: #{custom_multi_head_attention.6} parent=0 // loop_pre_header
    _
  $region3: #{custom_multi_head_attention.6} parent=0 // loop_header
    %s22 = sphi 0, %s26
    %p23 = scmp.ge.s32.totalorder %s22, 4
    %s32 = sphi 0, %s34
    %s35 = sphi 0, %s32
    %s36 = sphi 0, %s35
    %s52 = sphi 0, %s36
    %s58 = sphi 0, %s60
    %s61 = sphi 0, %s58
    %s62 = sphi 0, %s61
    %s78 = sphi 0, %s62
  $region4: #{custom_multi_head_attention.6} parent=0 // loop_header_branch
    %25 = sbr.rel (%p23) target = $region8
  $region5: #{custom_multi_head_attention.6} parent=0 // loop_body
    %s27 = ssub.s32 %s22, 1
    %s28 = ssub.s32 %s22, 2
    %s29 = sadd.s32 %s22, 1
    %s30 = ssub.s32 %s22, %s29
    %p31 = scmp.eq.s32.totalorder %s30, 0
    %s33 = sadd.s32 %s32, 1
    %s34 = scalar_select %p31, %s32, %s33
    %p37 = pneg %p31
    %p38 = scmp.eq.s32.totalorder %s22, 1
    %p39 = por %p37, %p38
    %p40 = scmp.ne.s32.totalorder %s32, %s35
    %p41 = scmp.eq.s32.totalorder %s22, 0
    %p42 = por %p40, %p41
    %p43 = scmp.ne.s32.totalorder %s32, %s35
    %p44 = scmp.eq.s32.totalorder %s27, 1
    %p45 = por %p43, %p44
    %p46 = scmp.ne.s32.totalorder %s35, %s36
    %p47 = scmp.eq.s32.totalorder %s27, 0
    %p48 = por %p46, %p47
    %p49 = scmp.ne.s32.totalorder %s35, %s36
    %p50 = scmp.eq.s32.totalorder %s28, 1
    %p51 = por %p49, %p50
    %p53 = scmp.ne.s32.totalorder %s36, %s52
    %p54 = scmp.eq.s32.totalorder %s28, 0
    %p55 = por %p53, %p54
    %s56 = ssub.s32 %s22, %s29
    %p57 = scmp.eq.s32.totalorder %s56, 0
    %s59 = sadd.s32 %s58, 1
    %s60 = scalar_select %p57, %s58, %s59
    %p63 = pneg %p57
    %p64 = scmp.eq.s32.totalorder %s22, 1
    %p65 = por %p63, %p64
    %p66 = scmp.ne.s32.totalorder %s58, %s61
    %p67 = scmp.eq.s32.totalorder %s22, 0
    %p68 = por %p66, %p67
    %p69 = scmp.ne.s32.totalorder %s58, %s61
    %p70 = scmp.eq.s32.totalorder %s27, 1
    %p71 = por %p69, %p70
    %p72 = scmp.ne.s32.totalorder %s61, %s62
    %p73 = scmp.eq.s32.totalorder %s27, 0
    %p74 = por %p72, %p73
    %p75 = scmp.ne.s32.totalorder %s61, %s62
    %p76 = scmp.eq.s32.totalorder %s28, 1
    %p77 = por %p75, %p76
    %p79 = scmp.ne.s32.totalorder %s62, %s78
    %p80 = scmp.eq.s32.totalorder %s28, 0
    %p81 = por %p79, %p80
    %p82 = scmp.le.s32.totalorder 1, %s22
    %p83 = scmp.lt.s32.totalorder %s22, 3
    %p84 = pnand %p82, %p83
    %p85 = pneg %p84
    // Predicated region
    $region9: #{custom_multi_head_attention.6} parent=5 // pred_check
      _
    $region10: #{custom_multi_head_attention.6} parent=5 // pred_check_branch
      %87 = sbr.rel (%p84) target = $region12
    $region11: #{custom_multi_head_attention.6} parent=5 // pred_region
      %s88 = ssub.s32 %s22, 1
    $region12: #{custom_multi_head_attention.6} parent=5 // pred_fallthru
      _
    %p89 = scmp.lt.s32.totalorder %s22, 2
    // Predicated region
    $region13: #{custom_multi_head_attention.6} parent=5 // pred_check
      %p90 = pneg %p89
    $region14: #{custom_multi_head_attention.6} parent=5 // pred_check_branch
      %92 = sbr.rel (%p90) target = $region16
    $region15: #{custom_multi_head_attention.6} parent=5 // pred_region
      // Predicated region
      $region17: #{custom_multi_head_attention.6} parent=15 // pred_check
        %p93 = pneg %p42
      $region18: #{custom_multi_head_attention.6} parent=15 // pred_check_branch
        %95 = sbr.rel (%p93) target = $region20
      $region19: #{custom_multi_head_attention.6} parent=15 // pred_region
        %p96 = scmp.lt.s32.totalorder %s22, 1
        %s97 = scalar_select %p96, %s22, 1
        %s98 = smul.addr %s97, 8
        %s99 = scalar_lea.vmem %s2, %s98
      $region20: #{custom_multi_head_attention.6} parent=15 // pred_fallthru
        _
    $region16: #{custom_multi_head_attention.6} parent=5 // pred_fallthru
      _
    %p100 = scmp.le.s32.totalorder 1, %s22
    %p101 = scmp.lt.s32.totalorder %s22, 3
    %p102 = pnand %p100, %p101
    %p103 = pneg %p102
    // Predicated region
    $region21: #{custom_multi_head_attention.6} parent=5 // pred_check
      _
    $region22: #{custom_multi_head_attention.6} parent=5 // pred_check_branch
      %105 = sbr.rel (%p102) target = $region24
    $region23: #{custom_multi_head_attention.6} parent=5 // pred_region
      %s106 = ssub.s32 %s22, 1
      %p107 = scmp.lt.s32.totalorder %s27, 1
      %s108 = scalar_select %p107, %s27, 1
      %s109 = smul.addr %s108, 8
      %s110 = scalar_lea.vmem %s2, %s109
      %p111 = pneg %p48
      %p112 = pneg %p45
      %p113 = pneg %p74
      %p114 = pneg %p71
      %p115 = scmp.lt.s32.totalorder %s27, 1
      %s116 = scalar_select %p115, %s27, 1
      %s117 = smul.addr %s116, 8
      %s118 = scalar_lea.vmem %s3, %s117
      %p119 = scmp.lt.s32.totalorder %s27, 1
      %s120 = scalar_select %p119, %s27, 1
      %s121 = smul.addr %s120, 8
      %s122 = scalar_lea.vmem %s2, %s121
      %p123 = scmp.lt.s32.totalorder %s27, 1
      %s124 = scalar_select %p123, %s27, 1
      %s125 = smul.addr %s124, 8
      %s126 = scalar_lea.vmem %s3, %s125
      %v127 = vlaneseq
      %v128 = vshrl.u32 %v127, 7
      %v129 = vlaneseq
      %v130 = vand.u32 %v129, 127
      %s131 = sld [smem:[#allocation3]]
      %v132 = vstv %s131
      %v133 = vadd.s32 %v128, %v132
      %vm134 = vcmp.ge.s32.totalorder %v133, 8
      %v135 = vsub.s32 %v133, 8
      %v136 = vsel %vm134, %v135, %v133
      %s137 = smul.u32 %s27, 128
      %s138 = sld [smem:[#allocation4 + %s137]]
      %vm139 = vcmp.eq.s32.totalorder %v130, %v136
      %v140 = vstv %s138
      %v141 = vsel %vm139, %v140, 0.0
      %v142 = vadd.f32 %v141, 0.0
      %s143 = sld [smem:[#allocation3 + $0x1]]
      %v144 = vstv %s143
      %v145 = vadd.s32 %v128, %v144
      %vm146 = vcmp.ge.s32.totalorder %v145, 8
      %v147 = vsub.s32 %v145, 8
      %v148 = vsel %vm146, %v147, %v145
      %s149 = sadd.s32 %s137, 1
      %s150 = sld [smem:[#allocation4 + %s149]]
      %vm151 = vcmp.eq.s32.totalorder %v130, %v148
      %v152 = vstv %s150
      %v153 = vsel %vm151, %v152, 0.0
      %v154 = vadd.f32 %v142, %v153
      %v155 = vld [vmem:[%s122] sm:$0xff]
      %vm156 = vcmask 64512
      %v158 = vsel %vm156, %v154, 0
      %160 = vmatpush.msra.mxu0 0.0
      %161 = vmatpush.msra.mxu0 0.0
      %162 = vmatpush.msra.mxu0 0.0
      %163 = vmatpush.msra.mxu0 0.0
      %164 = vmatpush.msra.mxu0 0.0
      %165 = vmatpush.msra.mxu0 0.0
      %166 = vmatpush.msra.mxu0 0.0
      %167 = vmatpush.msra.mxu0 0.0
      %168 = vmatpush.msra.mxu0 0.0
      %169 = vmatpush.msra.mxu0 0.0
      %170 = vmatpush.msra.mxu0 0.0
      %171 = vmatpush.msra.mxu0 0.0
      %172 = vmatpush.msra.mxu0 0.0
      %173 = vmatpush.msra.mxu0 0.0
      %174 = vmatpush.msra.mxu0 0.0
      %175 = vmatpush.msra.mxu0 %v155
      %176 = vmatmul.f32.gmra.mxu0 %v158
      %v177 = vpop.f32.mrf.mxu0
      %v178 = vadd.f32 0.0, %v177
      %179 = vdwg.mxu0
      %vm180 = vcmask 261120
      %181 = vst.msk [vmem:[%s126] sm:$0xff] %vm180, %v178
      %p182 = scmp.lt.s32.totalorder %s27, 1
      %s183 = scalar_select %p182, %s27, 1
      %s184 = smul.addr %s183, 8
      %s185 = scalar_lea.vmem %s3, %s184
      // Predicated region
      $region25: #{custom_multi_head_attention.6} parent=23 // pred_check
        %p186 = pneg %p71
      $region26: #{custom_multi_head_attention.6} parent=23 // pred_check_branch
        %188 = sbr.rel (%p186) target = $region28
      $region27: #{custom_multi_head_attention.6} parent=23 // pred_region
        _
      $region28: #{custom_multi_head_attention.6} parent=23 // pred_fallthru
        _
    $region24: #{custom_multi_head_attention.6} parent=5 // pred_fallthru
      _
    %p189 = scmp.le.s32.totalorder 2, %s22
    // Predicated region
    $region29: #{custom_multi_head_attention.6} parent=5 // pred_check
      %p190 = pneg %p189
    $region30: #{custom_multi_head_attention.6} parent=5 // pred_check_branch
      %192 = sbr.rel (%p190) target = $region32
    $region31: #{custom_multi_head_attention.6} parent=5 // pred_region
      %s193 = ssub.s32 %s22, 2
      // Predicated region
      $region33: #{custom_multi_head_attention.6} parent=31 // pred_check
        %p194 = pneg %p77
      $region34: #{custom_multi_head_attention.6} parent=31 // pred_check_branch
        %196 = sbr.rel (%p194) target = $region36
      $region35: #{custom_multi_head_attention.6} parent=31 // pred_region
        %p197 = scmp.lt.s32.totalorder %s28, 1
        %s198 = scalar_select %p197, %s28, 1
        %s199 = smul.addr %s198, 8
        %s200 = scalar_lea.vmem %s3, %s199
      $region36: #{custom_multi_head_attention.6} parent=31 // pred_fallthru
        _
    $region32: #{custom_multi_head_attention.6} parent=5 // pred_fallthru
      _
  $region6: #{custom_multi_head_attention.6} parent=0 // loop_footer
    %s26 = sadd.s32 1, %s22
  $region7: #{custom_multi_head_attention.6} parent=0 // loop_footer_branch
    %21 = sbr.rel target = $region3
  $region8: #{custom_multi_head_attention.6} parent=0 // loop_exit
    _

// kernel: custom_multi_head_attention.7
$region0: #{custom_multi_head_attention.7}
  #allocation0 [shape = 'u32[]', space=smem, size = 0x4, offset = 0x4, fixed_abs, tag = 'smem constant byte address 0x4 - core index']
  #allocation1 [shape = 'u32[72,128]{1,0:T(1,128)}', space=vmem, size = 0x9000, scoped, tag = 'internal scratch']
  %s0 = inlined_call_operand.vmem [shape: f32[16,32], index: 0, kind: input, shape index: {}]
  %s1 = inlined_call_operand.vmem [shape: f32[32,32], index: 1, kind: input, shape index: {}]
  %s2 = inlined_call_operand.vmem [shape: f32[1,32], index: 2, kind: input, shape index: {}]
  %s3 = inlined_call_operand.hbm [shape: f32[16,32], index: 3, kind: output, shape index: {}]
  %s4 = sld [smem:[#allocation0]]
  $region22: #{custom_multi_head_attention.7} parent=0
    _
  %s6 = ssub.s32 1, %s4
  %s7 = scalar_select 0, %s6, %s4
  $region1: #{custom_multi_head_attention.7} parent=0
    #allocation2 [shape = 'u8[8192]{0}', space=vmem, size = 0x2000, scoped, tag = 'output window, operand 0, single buffered']
    #allocation3 [shape = 's32[1]{0}', space=sflag, size = 0x4, scoped, tag = 'scoped memory for custom_multi_head_attention.7']
    %8 = vsyncpa [#allocation3], 0
    // Predicated region
    $region2: #{custom_multi_head_attention.7} parent=1 // pred_check
      _
    $region3: #{custom_multi_head_attention.7} parent=1 // pred_check_branch
      %10 = sbr.rel (0) target = $region5
    $region4: #{custom_multi_head_attention.7} parent=1 // pred_region
      _
    $region5: #{custom_multi_head_attention.7} parent=1 // pred_fallthru
      _
    // Predicated region
    $region6: #{custom_multi_head_attention.7} parent=1 // pred_check
      _
    $region7: #{custom_multi_head_attention.7} parent=1 // pred_check_branch
      %12 = sbr.rel (0) target = $region9
    $region8: #{custom_multi_head_attention.7} parent=1 // pred_region
      _
    $region9: #{custom_multi_head_attention.7} parent=1 // pred_fallthru
      _
    // Predicated region
    $region10: #{custom_multi_head_attention.7} parent=1 // pred_check
      _
    $region11: #{custom_multi_head_attention.7} parent=1 // pred_check_branch
      %14 = sbr.rel (0) target = $region13
    $region12: #{custom_multi_head_attention.7} parent=1 // pred_region
      _
    $region13: #{custom_multi_head_attention.7} parent=1 // pred_fallthru
      _
    %v15 = vld [vmem:[%s0] sm:$0xff]
    %v16 = vld [vmem:[%s0 + $0x8] sm:$0xff]
    %v17 = vld [vmem:[%s1] sm:$0xff]
    %v18 = vld [vmem:[%s1 + $0x8] sm:$0xff]
    %v19 = vld [vmem:[%s1 + $0x10] sm:$0xff]
    %v20 = vld [vmem:[%s1 + $0x18] sm:$0xff]
    %v21 = vld [vmem:[%s2] sm:$0x1]
    %v23 = vperm.slane %v21, 0
    %vm25 = vcmask 261120
    %v27 = vsel %vm25, %v15, 0
    %v30 = vsel %vm25, %v16, 0
    %32 = vmatpush.msra.mxu0 0.0
    %33 = vmatpush.msra.mxu0 0.0
    %34 = vmatpush.msra.mxu0 0.0
    %35 = vmatpush.msra.mxu0 0.0
    %36 = vmatpush.msra.mxu0 0.0
    %37 = vmatpush.msra.mxu0 0.0
    %38 = vmatpush.msra.mxu0 0.0
    %39 = vmatpush.msra.mxu0 0.0
    %40 = vmatpush.msra.mxu0 0.0
    %41 = vmatpush.msra.mxu0 0.0
    %42 = vmatpush.msra.mxu0 0.0
    %43 = vmatpush.msra.mxu0 0.0
    %44 = vmatpush.msra.mxu0 %v20
    %45 = vmatpush.msra.mxu0 %v19
    %46 = vmatpush.msra.mxu0 %v18
    %47 = vmatpush.msra.mxu0 %v17
    %48 = vmatmul.f32.gmra.mxu0 %v27
    %v49 = vpop.f32.mrf.mxu0
    %v50 = vadd.f32 %v23, %v49
    %51 = vmatmul.f32.gmra.mxu0 %v30
    %v52 = vpop.f32.mrf.mxu0
    %v53 = vadd.f32 %v23, %v52
    %54 = vdwg.mxu0
    %55 = vst.msk [vmem:[#allocation2] sm:$0xff] %vm25, %v50
    %56 = vst.msk [vmem:[#allocation2 + $0x8] sm:$0xff] %vm25, %v53
    // Predicated region
    $region14: #{custom_multi_head_attention.7} parent=1 // pred_check
      _
    $region15: #{custom_multi_head_attention.7} parent=1 // pred_check_branch
      %58 = sbr.rel (0) target = $region17
    $region16: #{custom_multi_head_attention.7} parent=1 // pred_region
      %60 = vsyncadd [#allocation3], 0
      %s61 = sshll.u32 [#allocation2], 4
      %s62 = int_to_ptr.vmem [resolvable:$true] %s61
      %s63 = sshll.u32 %s3, 4
      %s64 = int_to_ptr.hbm [resolvable:$true] %s63
      %69 = dma.vmem_to_hbm [thread:$0]  %s62, 256, %s64, [#allocation3], 128, 128, 8
    $region17: #{custom_multi_head_attention.7} parent=1 // pred_fallthru
      _
    // Predicated region
    $region18: #{custom_multi_head_attention.7} parent=1 // pred_check
      _
    $region19: #{custom_multi_head_attention.7} parent=1 // pred_check_branch
      %71 = sbr.rel (0) target = $region21
    $region20: #{custom_multi_head_attention.7} parent=1 // pred_region
      %73 = dma.done [#allocation3], 256
    $region21: #{custom_multi_head_attention.7} parent=1 // pred_fallthru
      _
    %74 = vsyncpa [#allocation3], 1

</llo_original>
